<compile_context>
chip_gen: v7x
topology: tpu7x:2x2x1
jax: 0.10.0
libtpu: 0.0.40
codegen_flags: <defaults>
</compile_context>

<pallas_src>
import math
import numpy as np
import jax
import jax.numpy as jnp
from jax import lax
from jax.experimental import pallas as pl
from jax.experimental.pallas import tpu as pltpu  # noqa: F401  (not needed for this small fused kernel)

# --- problem sizes (small, consistent with the module) ---
B, S, D = 2, 8, 32          # batch, seq, d_model
H = 4                       # heads
HD = D // H                 # head_dim
N = B * S                   # flattened tokens
DFF = 2048                  # ffn default d_ff
EPS = 1e-6                  # normallayer eps
NEG = -1e9                  # masked_fill value


def _layernorm(v, gamma, beta):
    # matches: gamma * (x - mean) / (std + eps) + beta, torch.std unbiased (ddof=1)
    m = jnp.mean(v, axis=-1, keepdims=True)
    var = jnp.sum((v - m) ** 2, axis=-1, keepdims=True) * (1.0 / (D - 1))
    std = jnp.sqrt(var)
    inv = pl.reciprocal(std + EPS, approx=True)
    return gamma * (v - m) * inv + beta


def encoder_layer_kernel(x_ref, amask_ref, wfuse_ref, bfuse_ref, pvec_ref,
                         w1_ref, b1_ref, w2t_ref, out_ref):
    # Flatten tokens: (B, S, D) -> (N, D); only leading dims change (safe reshape).
    x = x_ref[...].reshape(N, D)
    amask = amask_ref[...]                       # (N, N) additive, block-diagonal over batch

    pv = pvec_ref[...]                           # (5, D): g1, be1, g2, be2, b2
    g1, be1, g2, be2, b2 = pv[0:1], pv[1:2], pv[2:3], pv[3:4], pv[4:5]

    wfuse = wfuse_ref[...]                       # (D, 4D) = [wq | wk | wv | wo]
    bfuse = bfuse_ref[...]                       # (1, 4D) = [bq | bk | bv | bo]
    wqkv = wfuse[:, :3 * D]
    wo = wfuse[:, 3 * D:]
    bqkv = bfuse[:, :3 * D]
    bo = bfuse[:, 3 * D:]

    # ---- norm1 ----
    x2 = _layernorm(x, g1, be1)                  # (N, D)

    # ---- multi-head self-attention (q = k = v = x2) ----
    # single fused QKV projection
    qkv = jnp.dot(x2, wqkv, preferred_element_type=jnp.float32) + bqkv   # (N, 3D)

    # head-batched layout (H, N, HD) via lane slices + leading-dim stack
    q = jnp.stack([qkv[:, 0 * D + h * HD: 0 * D + (h + 1) * HD] for h in range(H)], axis=0)
    k = jnp.stack([qkv[:, 1 * D + h * HD: 1 * D + (h + 1) * HD] for h in range(H)], axis=0)
    v = jnp.stack([qkv[:, 2 * D + h * HD: 2 * D + (h + 1) * HD] for h in range(H)], axis=0)

    # one batched contraction over heads; cross-batch and padded keys get -1e9 added,
    # which underflows to 0 after softmax (matches masked_fill(-1e9) numerically).
    scores = jnp.einsum('hqd,hkd->hqk', q, k, preferred_element_type=jnp.float32)
    scores = scores * (1.0 / math.sqrt(HD)) + amask[None, :, :]           # (H, N, N)
    scores = scores - jnp.max(scores, axis=-1, keepdims=True)
    e = jnp.exp(scores)
    p = e * pl.reciprocal(jnp.sum(e, axis=-1, keepdims=True), approx=True)
    o = jnp.einsum('hqk,hkd->hqd', p, v, preferred_element_type=jnp.float32)  # (H, N, HD)

    attn = jnp.concatenate([o[h] for h in range(H)], axis=-1)             # (N, D)
    attn = jnp.dot(attn, wo, preferred_element_type=jnp.float32) + bo

    # residual — NOTE: the PyTorch code adds attn to x2 (not x); reproduce exactly.
    xr = x2 + attn
    # TODO(synk): dropout_1 / dropout_2 / ffn.dropout treated as identity (eval mode).

    # ---- norm2 + FFN (bf16 MXU operands, f32 accumulation) ----
    x2b = _layernorm(xr, g2, be2)
    h1 = jnp.dot(x2b.astype(jnp.bfloat16), w1_ref[...],
                 preferred_element_type=jnp.float32) + b1_ref[...]        # (N, DFF)
    h1 = jnp.maximum(h1, 0.0)                                             # ReLU
    # w2 stored transposed as (D, DFF) so the big weight is lane-dense; contract on DFF.
    f = lax.dot_general(h1.astype(jnp.bfloat16), w2t_ref[...],
                        dimension_numbers=(((1,), (1,)), ((), ())),
                        preferred_element_type=jnp.float32) + b2          # (N, D)

    out_ref[...] = (xr + f).reshape(B, S, D)


def encoder_layer(x, mask, params):
    (wq, bq, wk, bk, wv, bv, wo, bo, g1, be1, g2, be2, w1, b1, w2, b2) = params

    # --- host-side parameter consolidation / layout prep (all cheap, tiny tensors) ---
    wfuse = jnp.concatenate([wq, wk, wv, wo], axis=1)        # (D, 4D) = (32, 128), lane-dense
    bfuse = jnp.concatenate([bq, bk, bv, bo], axis=1)        # (1, 4D)
    pvec = jnp.concatenate([g1, be1, g2, be2, b2], axis=0)   # (5, D)

    w1_bf = w1.astype(jnp.bfloat16)                          # (D, DFF)
    w2t_bf = w2.T.astype(jnp.bfloat16)                       # (D, DFF)  lane-dense (2048 lanes)

    # additive mask, block-diagonal over batches: (N, N)
    add = jnp.where(mask == 0, NEG, 0.0).astype(jnp.float32)  # (B, S, S)
    amask = jnp.full((N, N), NEG, jnp.float32)
    for b in range(B):
        amask = amask.at[b * S:(b + 1) * S, b * S:(b + 1) * S].set(add[b])

    # Single invocation, no grid: every operand is a full-array VMEM block
    # (total footprint ~0.3 MB), nothing is double-buffered.
    return pl.pallas_call(
        encoder_layer_kernel,
        out_shape=jax.ShapeDtypeStruct((B, S, D), jnp.float32),
    )(x, amask, wfuse, bfuse, pvec, w1_bf, b1, w2t_bf)


def reference(x, mask, params):
    """Pure-JAX reference reproducing the PyTorch forward exactly (eval mode, f32)."""
    (wq, bq, wk, bk, wv, bv, wo, bo, g1, be1, g2, be2, w1, b1, w2, b2) = params

    def ln(v, g, b):
        m = v.mean(-1, keepdims=True)
        var = ((v - m) ** 2).sum(-1, keepdims=True) / (D - 1)
        return g * (v - m) / (jnp.sqrt(var) + EPS) + b

    x2 = ln(x, g1, be1)
    q = (x2 @ wq + bq).reshape(B, S, H, HD).transpose(0, 2, 1, 3)
    k = (x2 @ wk + bk).reshape(B, S, H, HD).transpose(0, 2, 1, 3)
    v = (x2 @ wv + bv).reshape(B, S, H, HD).transpose(0, 2, 1, 3)
    scores = jnp.einsum('bhqd,bhkd->bhqk', q, k) / math.sqrt(HD)
    scores = jnp.where(mask[:, None] == 0, NEG, scores)
    p = jax.nn.softmax(scores, axis=-1)
    o = jnp.einsum('bhqk,bhkd->bhqd', p, v).transpose(0, 2, 1, 3).reshape(B, S, D)
    attn = o @ wo + bo
    xr = x2 + attn
    x2b = ln(xr, g2, be2)
    ff = jnp.maximum(x2b @ w1 + b1, 0.0) @ w2 + b2
    return xr + ff


def make_params(key):
    ks = jax.random.split(key, 12)
    wscale, bscale = 0.05, 0.01
    wq = jax.random.normal(ks[0], (D, D), jnp.float32) * wscale
    wk = jax.random.normal(ks[1], (D, D), jnp.float32) * wscale
    wv = jax.random.normal(ks[2], (D, D), jnp.float32) * wscale
    wo = jax.random.normal(ks[3], (D, D), jnp.float32) * wscale
    bq = jax.random.normal(ks[4], (1, D), jnp.float32) * bscale
    bk = jax.random.normal(ks[5], (1, D), jnp.float32) * bscale
    bv = jax.random.normal(ks[6], (1, D), jnp.float32) * bscale
    bo = jax.random.normal(ks[7], (1, D), jnp.float32) * bscale
    g1, be1 = jnp.ones((1, D), jnp.float32), jnp.zeros((1, D), jnp.float32)
    g2, be2 = jnp.ones((1, D), jnp.float32), jnp.zeros((1, D), jnp.float32)
    w1 = jax.random.normal(ks[8], (D, DFF), jnp.float32) * wscale
    b1 = jax.random.normal(ks[9], (1, DFF), jnp.float32) * bscale
    w2 = jax.random.normal(ks[10], (DFF, D), jnp.float32) * wscale
    b2 = jax.random.normal(ks[11], (1, D), jnp.float32) * bscale
    return (wq, bq, wk, bk, wv, bv, wo, bo, g1, be1, g2, be2, w1, b1, w2, b2)


if __name__ == "__main__":
    key = jax.random.PRNGKey(0)
    kx, kp = jax.random.split(key)
    x = jax.random.normal(kx, (B, S, D), jnp.float32)

    # deterministic mask: last 2 key positions are padding (mask == 0)
    mask = jnp.ones((B, S, S), jnp.float32).at[:, :, -2:].set(0.0)

    params = make_params(kp)

    out = encoder_layer(x, mask, params)
    out = jax.block_until_ready(out)

    ref = reference(x, mask, params)
    np.testing.assert_allclose(np.asarray(out), np.asarray(ref), rtol=5e-2, atol=5e-2)

    print("KERNEL_OK")
</pallas_src>

<mosaic_0001>
module attributes {stable_mosaic.version = 11 : i64} {
  func.func @encoder_layer_kernel(%arg0: memref<2x8x32xf32, #tpu.memory_space<vmem>>, %arg1: memref<16x16xf32, #tpu.memory_space<vmem>>, %arg2: memref<32x128xf32, #tpu.memory_space<vmem>>, %arg3: memref<1x128xf32, #tpu.memory_space<vmem>>, %arg4: memref<5x32xf32, #tpu.memory_space<vmem>>, %arg5: memref<32x2048xbf16, #tpu.memory_space<vmem>>, %arg6: memref<1x2048xf32, #tpu.memory_space<vmem>>, %arg7: memref<32x2048xbf16, #tpu.memory_space<vmem>>, %arg8: memref<2x8x32xf32, #tpu.memory_space<vmem>>) attributes {dimension_semantics = [], scalar_prefetch = 0 : i64, scratch_operands = 0 : i64, tpu.core_type = #tpu.core_type<tc>} {
    %c0 = arith.constant 0 : index
    %c0_0 = arith.constant 0 : index
    %c0_1 = arith.constant 0 : index
    %0 = vector.load %arg0[%c0, %c0_0, %c0_1] : memref<2x8x32xf32, #tpu.memory_space<vmem>>, vector<2x8x32xf32>
    %1 = vector.shape_cast %0 : vector<2x8x32xf32> to vector<16x32xf32>
    %c0_2 = arith.constant 0 : index
    %c0_3 = arith.constant 0 : index
    %2 = vector.load %arg1[%c0_2, %c0_3] : memref<16x16xf32, #tpu.memory_space<vmem>>, vector<16x16xf32>
    %c0_4 = arith.constant 0 : index
    %c0_5 = arith.constant 0 : index
    %3 = vector.load %arg4[%c0_4, %c0_5] : memref<5x32xf32, #tpu.memory_space<vmem>>, vector<5x32xf32>
    %4 = vector.extract_strided_slice %3 {offsets = [0, 0], sizes = [1, 32], strides = [1, 1]} : vector<5x32xf32> to vector<1x32xf32>
    %5 = vector.extract_strided_slice %3 {offsets = [1, 0], sizes = [1, 32], strides = [1, 1]} : vector<5x32xf32> to vector<1x32xf32>
    %6 = vector.extract_strided_slice %3 {offsets = [2, 0], sizes = [1, 32], strides = [1, 1]} : vector<5x32xf32> to vector<1x32xf32>
    %7 = vector.extract_strided_slice %3 {offsets = [3, 0], sizes = [1, 32], strides = [1, 1]} : vector<5x32xf32> to vector<1x32xf32>
    %8 = vector.extract_strided_slice %3 {offsets = [4, 0], sizes = [1, 32], strides = [1, 1]} : vector<5x32xf32> to vector<1x32xf32>
    %c0_6 = arith.constant 0 : index
    %c0_7 = arith.constant 0 : index
    %9 = vector.load %arg2[%c0_6, %c0_7] : memref<32x128xf32, #tpu.memory_space<vmem>>, vector<32x128xf32>
    %c0_8 = arith.constant 0 : index
    %c0_9 = arith.constant 0 : index
    %10 = vector.load %arg3[%c0_8, %c0_9] : memref<1x128xf32, #tpu.memory_space<vmem>>, vector<1x128xf32>
    %11 = vector.extract_strided_slice %9 {offsets = [0, 0], sizes = [32, 96], strides = [1, 1]} : vector<32x128xf32> to vector<32x96xf32>
    %12 = vector.extract_strided_slice %9 {offsets = [0, 96], sizes = [32, 32], strides = [1, 1]} : vector<32x128xf32> to vector<32x32xf32>
    %13 = vector.extract_strided_slice %10 {offsets = [0, 0], sizes = [1, 96], strides = [1, 1]} : vector<1x128xf32> to vector<1x96xf32>
    %14 = vector.extract_strided_slice %10 {offsets = [0, 96], sizes = [1, 32], strides = [1, 1]} : vector<1x128xf32> to vector<1x32xf32>
    %cst = arith.constant dense<0.000000e+00> : vector<16xf32>
    %15 = vector.multi_reduction <add>, %1, %cst [1] : vector<16x32xf32> to vector<16xf32>
    %16 = vector.shape_cast %15 : vector<16xf32> to vector<16x1xf32>
    %cst_10 = arith.constant 3.200000e+01 : f32
    %17 = vector.broadcast %cst_10 : f32 to vector<16x1xf32>
    %18 = arith.divf %16, %17 : vector<16x1xf32>
    %19 = vector.broadcast %18 : vector<16x1xf32> to vector<16x32xf32>
    %20 = arith.subf %1, %19 : vector<16x32xf32>
    %21 = arith.mulf %20, %20 : vector<16x32xf32>
    %cst_11 = arith.constant dense<0.000000e+00> : vector<16xf32>
    %22 = vector.multi_reduction <add>, %21, %cst_11 [1] : vector<16x32xf32> to vector<16xf32>
    %23 = vector.shape_cast %22 : vector<16xf32> to vector<16x1xf32>
    %cst_12 = arith.constant 0.0322580636 : f32
    %24 = vector.broadcast %cst_12 : f32 to vector<16x1xf32>
    %25 = arith.mulf %23, %24 : vector<16x1xf32>
    %26 = math.sqrt %25 : vector<16x1xf32>
    %cst_13 = arith.constant 9.99999997E-7 : f32
    %27 = vector.broadcast %cst_13 : f32 to vector<16x1xf32>
    %28 = arith.addf %26, %27 : vector<16x1xf32>
    %29 = tpu.reciprocal %28 {approx = true} : vector<16x1xf32> -> vector<16x1xf32>
    %30 = vector.broadcast %18 : vector<16x1xf32> to vector<16x32xf32>
    %31 = arith.subf %1, %30 : vector<16x32xf32>
    %32 = vector.broadcast %4 : vector<1x32xf32> to vector<16x32xf32>
    %33 = arith.mulf %32, %31 : vector<16x32xf32>
    %34 = vector.broadcast %29 : vector<16x1xf32> to vector<16x32xf32>
    %35 = arith.mulf %33, %34 : vector<16x32xf32>
    %36 = vector.broadcast %5 : vector<1x32xf32> to vector<16x32xf32>
    %37 = arith.addf %35, %36 : vector<16x32xf32>
    %cst_14 = arith.constant dense<0.000000e+00> : vector<16x96xf32>
    %38 = tpu.matmul %37, %11, %cst_14 {dimension_numbers = #tpu.dot_dimension_numbers<[1], [0], [0], [1], [0, 0, 1, 1], [], []>} : vector<16x32xf32>, vector<32x96xf32>, vector<16x96xf32> -> vector<16x96xf32>
    %39 = vector.broadcast %13 : vector<1x96xf32> to vector<16x96xf32>
    %40 = arith.addf %38, %39 : vector<16x96xf32>
    %41 = vector.extract_strided_slice %40 {offsets = [0, 0], sizes = [16, 8], strides = [1, 1]} : vector<16x96xf32> to vector<16x8xf32>
    %42 = vector.extract_strided_slice %40 {offsets = [0, 8], sizes = [16, 8], strides = [1, 1]} : vector<16x96xf32> to vector<16x8xf32>
    %43 = vector.extract_strided_slice %40 {offsets = [0, 16], sizes = [16, 8], strides = [1, 1]} : vector<16x96xf32> to vector<16x8xf32>
    %44 = vector.extract_strided_slice %40 {offsets = [0, 24], sizes = [16, 8], strides = [1, 1]} : vector<16x96xf32> to vector<16x8xf32>
    %45 = vector.shape_cast %41 : vector<16x8xf32> to vector<1x16x8xf32>
    %46 = vector.shape_cast %42 : vector<16x8xf32> to vector<1x16x8xf32>
    %47 = vector.shape_cast %43 : vector<16x8xf32> to vector<1x16x8xf32>
    %48 = vector.shape_cast %44 : vector<16x8xf32> to vector<1x16x8xf32>
    %49 = tpu.concatenate %45, %46, %47, %48 in 0 : vector<1x16x8xf32>, vector<1x16x8xf32>, vector<1x16x8xf32>, vector<1x16x8xf32> -> vector<4x16x8xf32>
    %50 = vector.extract_strided_slice %40 {offsets = [0, 32], sizes = [16, 8], strides = [1, 1]} : vector<16x96xf32> to vector<16x8xf32>
    %51 = vector.extract_strided_slice %40 {offsets = [0, 40], sizes = [16, 8], strides = [1, 1]} : vector<16x96xf32> to vector<16x8xf32>
    %52 = vector.extract_strided_slice %40 {offsets = [0, 48], sizes = [16, 8], strides = [1, 1]} : vector<16x96xf32> to vector<16x8xf32>
    %53 = vector.extract_strided_slice %40 {offsets = [0, 56], sizes = [16, 8], strides = [1, 1]} : vector<16x96xf32> to vector<16x8xf32>
    %54 = vector.shape_cast %50 : vector<16x8xf32> to vector<1x16x8xf32>
    %55 = vector.shape_cast %51 : vector<16x8xf32> to vector<1x16x8xf32>
    %56 = vector.shape_cast %52 : vector<16x8xf32> to vector<1x16x8xf32>
    %57 = vector.shape_cast %53 : vector<16x8xf32> to vector<1x16x8xf32>
    %58 = tpu.concatenate %54, %55, %56, %57 in 0 : vector<1x16x8xf32>, vector<1x16x8xf32>, vector<1x16x8xf32>, vector<1x16x8xf32> -> vector<4x16x8xf32>
    %59 = vector.extract_strided_slice %40 {offsets = [0, 64], sizes = [16, 8], strides = [1, 1]} : vector<16x96xf32> to vector<16x8xf32>
    %60 = vector.extract_strided_slice %40 {offsets = [0, 72], sizes = [16, 8], strides = [1, 1]} : vector<16x96xf32> to vector<16x8xf32>
    %61 = vector.extract_strided_slice %40 {offsets = [0, 80], sizes = [16, 8], strides = [1, 1]} : vector<16x96xf32> to vector<16x8xf32>
    %62 = vector.extract_strided_slice %40 {offsets = [0, 88], sizes = [16, 8], strides = [1, 1]} : vector<16x96xf32> to vector<16x8xf32>
    %63 = vector.shape_cast %59 : vector<16x8xf32> to vector<1x16x8xf32>
    %64 = vector.shape_cast %60 : vector<16x8xf32> to vector<1x16x8xf32>
    %65 = vector.shape_cast %61 : vector<16x8xf32> to vector<1x16x8xf32>
    %66 = vector.shape_cast %62 : vector<16x8xf32> to vector<1x16x8xf32>
    %67 = tpu.concatenate %63, %64, %65, %66 in 0 : vector<1x16x8xf32>, vector<1x16x8xf32>, vector<1x16x8xf32>, vector<1x16x8xf32> -> vector<4x16x8xf32>
    "tpu.trace_start"() <{level = 10 : i32, message = "hqd,hkd->hqk"}> : () -> ()
    %cst_15 = arith.constant dense<0.000000e+00> : vector<4x16x16xf32>
    %68 = tpu.matmul %49, %58, %cst_15 {dimension_numbers = #tpu.dot_dimension_numbers<[2], [2], [1], [1], [0, 0, 0, 1, 1, 1], [0], [0]>} : vector<4x16x8xf32>, vector<4x16x8xf32>, vector<4x16x16xf32> -> vector<4x16x16xf32>
    "tpu.trace_stop"() : () -> ()
    %cst_16 = arith.constant 0.353553385 : f32
    %69 = vector.broadcast %cst_16 : f32 to vector<4x16x16xf32>
    %70 = arith.mulf %68, %69 : vector<4x16x16xf32>
    %71 = vector.shape_cast %2 : vector<16x16xf32> to vector<1x16x16xf32>
    %72 = vector.broadcast %71 : vector<1x16x16xf32> to vector<4x16x16xf32>
    %73 = arith.addf %70, %72 : vector<4x16x16xf32>
    %cst_17 = arith.constant dense<0xFF800000> : vector<4x16xf32>
    %74 = vector.multi_reduction <maximumf>, %73, %cst_17 [2] : vector<4x16x16xf32> to vector<4x16xf32>
    %75 = vector.shape_cast %74 : vector<4x16xf32> to vector<4x16x1xf32>
    %76 = vector.broadcast %75 : vector<4x16x1xf32> to vector<4x16x16xf32>
    %77 = arith.subf %73, %76 : vector<4x16x16xf32>
    %78 = math.exp %77 : vector<4x16x16xf32>
    %cst_18 = arith.constant dense<0.000000e+00> : vector<4x16xf32>
    %79 = vector.multi_reduction <add>, %78, %cst_18 [2] : vector<4x16x16xf32> to vector<4x16xf32>
    %80 = vector.shape_cast %79 : vector<4x16xf32> to vector<4x16x1xf32>
    %81 = tpu.reciprocal %80 {approx = true} : vector<4x16x1xf32> -> vector<4x16x1xf32>
    %82 = vector.broadcast %81 : vector<4x16x1xf32> to vector<4x16x16xf32>
    %83 = arith.mulf %78, %82 : vector<4x16x16xf32>
    "tpu.trace_start"() <{level = 10 : i32, message = "hqk,hkd->hqd"}> : () -> ()
    %cst_19 = arith.constant dense<0.000000e+00> : vector<4x16x8xf32>
    %84 = tpu.matmul %83, %67, %cst_19 {dimension_numbers = #tpu.dot_dimension_numbers<[2], [1], [1], [2], [0, 0, 0, 1, 1, 2], [0], [0]>} : vector<4x16x16xf32>, vector<4x16x8xf32>, vector<4x16x8xf32> -> vector<4x16x8xf32>
    "tpu.trace_stop"() : () -> ()
    %85 = vector.extract_strided_slice %84 {offsets = [0, 0, 0], sizes = [1, 16, 8], strides = [1, 1, 1]} : vector<4x16x8xf32> to vector<1x16x8xf32>
    %86 = vector.shape_cast %85 : vector<1x16x8xf32> to vector<16x8xf32>
    %87 = vector.extract_strided_slice %84 {offsets = [1, 0, 0], sizes = [1, 16, 8], strides = [1, 1, 1]} : vector<4x16x8xf32> to vector<1x16x8xf32>
    %88 = vector.shape_cast %87 : vector<1x16x8xf32> to vector<16x8xf32>
    %89 = vector.extract_strided_slice %84 {offsets = [2, 0, 0], sizes = [1, 16, 8], strides = [1, 1, 1]} : vector<4x16x8xf32> to vector<1x16x8xf32>
    %90 = vector.shape_cast %89 : vector<1x16x8xf32> to vector<16x8xf32>
    %91 = vector.extract_strided_slice %84 {offsets = [3, 0, 0], sizes = [1, 16, 8], strides = [1, 1, 1]} : vector<4x16x8xf32> to vector<1x16x8xf32>
    %92 = vector.shape_cast %91 : vector<1x16x8xf32> to vector<16x8xf32>
    %93 = tpu.concatenate %86, %88, %90, %92 in 1 : vector<16x8xf32>, vector<16x8xf32>, vector<16x8xf32>, vector<16x8xf32> -> vector<16x32xf32>
    %cst_20 = arith.constant dense<0.000000e+00> : vector<16x32xf32>
    %94 = tpu.matmul %93, %12, %cst_20 {dimension_numbers = #tpu.dot_dimension_numbers<[1], [0], [0], [1], [0, 0, 1, 1], [], []>} : vector<16x32xf32>, vector<32x32xf32>, vector<16x32xf32> -> vector<16x32xf32>
    %95 = vector.broadcast %14 : vector<1x32xf32> to vector<16x32xf32>
    %96 = arith.addf %94, %95 : vector<16x32xf32>
    %97 = arith.addf %37, %96 : vector<16x32xf32>
    %cst_21 = arith.constant dense<0.000000e+00> : vector<16xf32>
    %98 = vector.multi_reduction <add>, %97, %cst_21 [1] : vector<16x32xf32> to vector<16xf32>
    %99 = vector.shape_cast %98 : vector<16xf32> to vector<16x1xf32>
    %cst_22 = arith.constant 3.200000e+01 : f32
    %100 = vector.broadcast %cst_22 : f32 to vector<16x1xf32>
    %101 = arith.divf %99, %100 : vector<16x1xf32>
    %102 = vector.broadcast %101 : vector<16x1xf32> to vector<16x32xf32>
    %103 = arith.subf %97, %102 : vector<16x32xf32>
    %104 = arith.mulf %103, %103 : vector<16x32xf32>
    %cst_23 = arith.constant dense<0.000000e+00> : vector<16xf32>
    %105 = vector.multi_reduction <add>, %104, %cst_23 [1] : vector<16x32xf32> to vector<16xf32>
    %106 = vector.shape_cast %105 : vector<16xf32> to vector<16x1xf32>
    %cst_24 = arith.constant 0.0322580636 : f32
    %107 = vector.broadcast %cst_24 : f32 to vector<16x1xf32>
    %108 = arith.mulf %106, %107 : vector<16x1xf32>
    %109 = math.sqrt %108 : vector<16x1xf32>
    %cst_25 = arith.constant 9.99999997E-7 : f32
    %110 = vector.broadcast %cst_25 : f32 to vector<16x1xf32>
    %111 = arith.addf %109, %110 : vector<16x1xf32>
    %112 = tpu.reciprocal %111 {approx = true} : vector<16x1xf32> -> vector<16x1xf32>
    %113 = vector.broadcast %101 : vector<16x1xf32> to vector<16x32xf32>
    %114 = arith.subf %97, %113 : vector<16x32xf32>
    %115 = vector.broadcast %6 : vector<1x32xf32> to vector<16x32xf32>
    %116 = arith.mulf %115, %114 : vector<16x32xf32>
    %117 = vector.broadcast %112 : vector<16x1xf32> to vector<16x32xf32>
    %118 = arith.mulf %116, %117 : vector<16x32xf32>
    %119 = vector.broadcast %7 : vector<1x32xf32> to vector<16x32xf32>
    %120 = arith.addf %118, %119 : vector<16x32xf32>
    %121 = arith.truncf %120 : vector<16x32xf32> to vector<16x32xbf16>
    %c0_26 = arith.constant 0 : index
    %c0_27 = arith.constant 0 : index
    %122 = vector.load %arg5[%c0_26, %c0_27] : memref<32x2048xbf16, #tpu.memory_space<vmem>>, vector<32x2048xbf16>
    %cst_28 = arith.constant dense<0.000000e+00> : vector<16x2048xf32>
    %123 = tpu.matmul %121, %122, %cst_28 {dimension_numbers = #tpu.dot_dimension_numbers<[1], [0], [0], [1], [0, 0, 1, 1], [], []>} : vector<16x32xbf16>, vector<32x2048xbf16>, vector<16x2048xf32> -> vector<16x2048xf32>
    %c0_29 = arith.constant 0 : index
    %c0_30 = arith.constant 0 : index
    %124 = vector.load %arg6[%c0_29, %c0_30] : memref<1x2048xf32, #tpu.memory_space<vmem>>, vector<1x2048xf32>
    %125 = vector.broadcast %124 : vector<1x2048xf32> to vector<16x2048xf32>
    %126 = arith.addf %123, %125 : vector<16x2048xf32>
    %cst_31 = arith.constant 0.000000e+00 : f32
    %127 = vector.broadcast %cst_31 : f32 to vector<16x2048xf32>
    %128 = arith.maximumf %126, %127 : vector<16x2048xf32>
    %129 = arith.truncf %128 : vector<16x2048xf32> to vector<16x2048xbf16>
    %c0_32 = arith.constant 0 : index
    %c0_33 = arith.constant 0 : index
    %130 = vector.load %arg7[%c0_32, %c0_33] : memref<32x2048xbf16, #tpu.memory_space<vmem>>, vector<32x2048xbf16>
    %cst_34 = arith.constant dense<0.000000e+00> : vector<16x32xf32>
    %131 = tpu.matmul %129, %130, %cst_34 {dimension_numbers = #tpu.dot_dimension_numbers<[1], [1], [0], [0], [0, 0, 1, 0], [], []>} : vector<16x2048xbf16>, vector<32x2048xbf16>, vector<16x32xf32> -> vector<16x32xf32>
    %132 = vector.broadcast %8 : vector<1x32xf32> to vector<16x32xf32>
    %133 = arith.addf %131, %132 : vector<16x32xf32>
    %134 = arith.addf %97, %133 : vector<16x32xf32>
    %135 = vector.shape_cast %134 : vector<16x32xf32> to vector<2x8x32xf32>
    %c0_35 = arith.constant 0 : index
    %c0_36 = arith.constant 0 : index
    %c0_37 = arith.constant 0 : index
    %136 = vector.load %arg8[%c0_35, %c0_36, %c0_37] : memref<2x8x32xf32, #tpu.memory_space<vmem>>, vector<2x8x32xf32>
    tpu.vector_store %arg8[%c0_35, %c0_36, %c0_37], %135 {strides = array<i32>} : memref<2x8x32xf32, #tpu.memory_space<vmem>>, vector<2x8x32xf32>,
    return
  }
}

</mosaic_0001>

<llo_original>
// kernel: tpu_custom_call.1
$region0: #{tpu_custom_call.1}
  #allocation0 [shape = 'u32[]', space=smem, size = 0x4, offset = 0x4, fixed_abs, tag = 'smem constant byte address 0x4 - core index']
  #allocation1 [shape = 'u32[144,128]{1,0:T(1,128)}', space=vmem, size = 0x12000, scoped, tag = 'internal scratch']
  %s0 = inlined_call_operand.hbm [shape: f32[2,8,32], index: 0, kind: input, shape index: {}]
  %s1 = inlined_call_operand.hbm [shape: f32[16,16], index: 1, kind: input, shape index: {}]
  %s2 = inlined_call_operand.hbm [shape: f32[32,128], index: 2, kind: input, shape index: {}]
  %s3 = inlined_call_operand.vmem [shape: f32[1,128], index: 3, kind: input, shape index: {}]
  %s4 = inlined_call_operand.hbm [shape: f32[5,32], index: 4, kind: input, shape index: {}]
  %s5 = inlined_call_operand.hbm [shape: bf16[32,2048], index: 5, kind: input, shape index: {}]
  %s6 = inlined_call_operand.vmem [shape: f32[1,2048], index: 6, kind: input, shape index: {}]
  %s7 = inlined_call_operand.hbm [shape: bf16[32,2048], index: 7, kind: input, shape index: {}]
  %s8 = inlined_call_operand.hbm [shape: f32[2,8,32], index: 8, kind: output, shape index: {}]
  %s9 = sld [smem:[#allocation0]]
  $region66: #{tpu_custom_call.1} parent=0
    _
  %s11 = ssub.s32 1, %s9
  %s12 = scalar_select 0, %s11, %s9
  $region1: #{tpu_custom_call.1} parent=0
    #allocation2 [shape = 'u8[8192]{0}', space=vmem, size = 0x2000, scoped, tag = 'input window, operand 0, single buffered']
    #allocation3 [shape = 's32[1]{0}', space=sflag, size = 0x4, scoped, tag = 'scoped memory for tpu_custom_call.1']
    #allocation4 [shape = 's32[1]{0}', space=sflag, size = 0x4, scoped, tag = 'scoped memory for tpu_custom_call.1']
    #allocation5 [shape = 'u8[8192]{0}', space=vmem, size = 0x2000, scoped, tag = 'input window, operand 1, single buffered']
    #allocation6 [shape = 's32[1]{0}', space=sflag, size = 0x4, scoped, tag = 'scoped memory for tpu_custom_call.1']
    #allocation7 [shape = 'u8[16384]{0}', space=vmem, size = 0x4000, scoped, tag = 'input window, operand 2, single buffered']
    #allocation8 [shape = 'u8[4096]{0}', space=vmem, size = 0x1000, scoped, tag = 'input window, operand 4, single buffered']
    #allocation9 [shape = 's32[1]{0}', space=sflag, size = 0x4, scoped, tag = 'scoped memory for tpu_custom_call.1']
    #allocation10 [shape = 'u8[131072]{0}', space=vmem, size = 0x20000, scoped, tag = 'input window, operand 5, single buffered']
    #allocation11 [shape = 'u8[131072]{0}', space=vmem, size = 0x20000, scoped, tag = 'input window, operand 7, single buffered']
    #allocation12 [shape = 's32[1]{0}', space=sflag, size = 0x4, scoped, tag = 'scoped memory for tpu_custom_call.1']
    #allocation13 [shape = 'u8[8192]{0}', space=vmem, size = 0x2000, scoped, tag = 'output window, operand 0, single buffered']
    %13 = vsyncpa [#allocation3], 0
    %14 = vsyncpa [#allocation6], 0
    %15 = vsyncpa [#allocation9], 0
    %16 = vsyncpa [#allocation12], 0
    %17 = vsyncpa [#allocation4], 0
    // Predicated region
    $region2: #{tpu_custom_call.1} parent=1 // pred_check
      _
    $region3: #{tpu_custom_call.1} parent=1 // pred_check_branch
      %19 = sbr.rel (0) target = $region5
    $region4: #{tpu_custom_call.1} parent=1 // pred_region
      %s21 = ssub.s32 256, 256
      %22 = vsyncadd [#allocation3], %s21
      %s23 = sshll.u32 [#allocation2], 4
      %s24 = int_to_ptr.vmem [resolvable:$true] %s23
      %29 = dma.hbm_to_vmem [thread:$0]  %s0, 256, %s24, [#allocation3], 128, 128, 8
    $region5: #{tpu_custom_call.1} parent=1 // pred_fallthru
      _
    // Predicated region
    $region6: #{tpu_custom_call.1} parent=1 // pred_check
      _
    $region7: #{tpu_custom_call.1} parent=1 // pred_check_branch
      %31 = sbr.rel (0) target = $region9
    $region8: #{tpu_custom_call.1} parent=1 // pred_region
      %s33 = ssub.s32 256, 256
      %34 = vsyncadd [#allocation6], %s33
      %s35 = sshll.u32 [#allocation5], 4
      %s36 = int_to_ptr.vmem [resolvable:$true] %s35
      %41 = dma.hbm_to_vmem [thread:$0]  %s1, 256, %s36, [#allocation6], 128, 128, 8
    $region9: #{tpu_custom_call.1} parent=1 // pred_fallthru
      _
    // Predicated region
    $region10: #{tpu_custom_call.1} parent=1 // pred_check
      _
    $region11: #{tpu_custom_call.1} parent=1 // pred_check_branch
      %43 = sbr.rel (0) target = $region13
    $region12: #{tpu_custom_call.1} parent=1 // pred_region
      %s45 = ssub.s32 512, 512
      %46 = vsyncadd [#allocation6], %s45
      %s47 = sshll.u32 [#allocation7], 4
      %s48 = int_to_ptr.vmem [resolvable:$true] %s47
      %53 = dma.hbm_to_vmem [thread:$0]  %s2, 512, %s48, [#allocation6], 128, 128, 8
    $region13: #{tpu_custom_call.1} parent=1 // pred_fallthru
      _
    // Predicated region
    $region14: #{tpu_custom_call.1} parent=1 // pred_check
      _
    $region15: #{tpu_custom_call.1} parent=1 // pred_check_branch
      %55 = sbr.rel (0) target = $region17
    $region16: #{tpu_custom_call.1} parent=1 // pred_region
      _
    $region17: #{tpu_custom_call.1} parent=1 // pred_fallthru
      _
    // Predicated region
    $region18: #{tpu_custom_call.1} parent=1 // pred_check
      _
    $region19: #{tpu_custom_call.1} parent=1 // pred_check_branch
      %57 = sbr.rel (0) target = $region21
    $region20: #{tpu_custom_call.1} parent=1 // pred_region
      %s59 = ssub.s32 128, 128
      %60 = vsyncadd [#allocation9], %s59
      %s62 = sshll.u32 [#allocation8], 4
      %s63 = int_to_ptr.vmem [resolvable:$true] %s62
      %65 = dma.hbm_to_vmem [thread:$0]  %s4, 128, %s63, [#allocation9]
    $region21: #{tpu_custom_call.1} parent=1 // pred_fallthru
      _
    // Predicated region
    $region22: #{tpu_custom_call.1} parent=1 // pred_check
      _
    $region23: #{tpu_custom_call.1} parent=1 // pred_check_branch
      %67 = sbr.rel (0) target = $region25
    $region24: #{tpu_custom_call.1} parent=1 // pred_region
      %s69 = ssub.s32 4096, 4096
      %70 = vsyncadd [#allocation9], %s69
      %s71 = sshll.u32 [#allocation10], 4
      %s72 = int_to_ptr.vmem [resolvable:$true] %s71
      %77 = dma.hbm_to_vmem [thread:$0]  %s5, 4096, %s72, [#allocation9], 1024, 1024, 64
    $region25: #{tpu_custom_call.1} parent=1 // pred_fallthru
      _
    // Predicated region
    $region26: #{tpu_custom_call.1} parent=1 // pred_check
      _
    $region27: #{tpu_custom_call.1} parent=1 // pred_check_branch
      %79 = sbr.rel (0) target = $region29
    $region28: #{tpu_custom_call.1} parent=1 // pred_region
      _
    $region29: #{tpu_custom_call.1} parent=1 // pred_fallthru
      _
    // Predicated region
    $region30: #{tpu_custom_call.1} parent=1 // pred_check
      _
    $region31: #{tpu_custom_call.1} parent=1 // pred_check_branch
      %81 = sbr.rel (0) target = $region33
    $region32: #{tpu_custom_call.1} parent=1 // pred_region
      %s83 = ssub.s32 4096, 4096
      %84 = vsyncadd [#allocation12], %s83
      %s85 = sshll.u32 [#allocation11], 4
      %s86 = int_to_ptr.vmem [resolvable:$true] %s85
      %91 = dma.hbm_to_vmem [thread:$0]  %s7, 4096, %s86, [#allocation12], 1024, 1024, 64
    $region33: #{tpu_custom_call.1} parent=1 // pred_fallthru
      _
    // Predicated region
    $region34: #{tpu_custom_call.1} parent=1 // pred_check
      _
    $region35: #{tpu_custom_call.1} parent=1 // pred_check_branch
      %93 = sbr.rel (0) target = $region37
    $region36: #{tpu_custom_call.1} parent=1 // pred_region
      %94 = dma.done [#allocation3], 256
    $region37: #{tpu_custom_call.1} parent=1 // pred_fallthru
      _
    // Predicated region
    $region38: #{tpu_custom_call.1} parent=1 // pred_check
      _
    $region39: #{tpu_custom_call.1} parent=1 // pred_check_branch
      %96 = sbr.rel (0) target = $region41
    $region40: #{tpu_custom_call.1} parent=1 // pred_region
      %97 = dma.done [#allocation6], 256
    $region41: #{tpu_custom_call.1} parent=1 // pred_fallthru
      _
    // Predicated region
    $region42: #{tpu_custom_call.1} parent=1 // pred_check
      _
    $region43: #{tpu_custom_call.1} parent=1 // pred_check_branch
      %99 = sbr.rel (0) target = $region45
    $region44: #{tpu_custom_call.1} parent=1 // pred_region
      %100 = dma.done [#allocation6], 512
    $region45: #{tpu_custom_call.1} parent=1 // pred_fallthru
      _
    // Predicated region
    $region46: #{tpu_custom_call.1} parent=1 // pred_check
      _
    $region47: #{tpu_custom_call.1} parent=1 // pred_check_branch
      %102 = sbr.rel (0) target = $region49
    $region48: #{tpu_custom_call.1} parent=1 // pred_region
      %103 = dma.done [#allocation9], 128
    $region49: #{tpu_custom_call.1} parent=1 // pred_fallthru
      _
    // Predicated region
    $region50: #{tpu_custom_call.1} parent=1 // pred_check
      _
    $region51: #{tpu_custom_call.1} parent=1 // pred_check_branch
      %105 = sbr.rel (0) target = $region53
    $region52: #{tpu_custom_call.1} parent=1 // pred_region
      %106 = dma.done [#allocation9], 4096
    $region53: #{tpu_custom_call.1} parent=1 // pred_fallthru
      _
    // Predicated region
    $region54: #{tpu_custom_call.1} parent=1 // pred_check
      _
    $region55: #{tpu_custom_call.1} parent=1 // pred_check_branch
      %108 = sbr.rel (0) target = $region57
    $region56: #{tpu_custom_call.1} parent=1 // pred_region
      %109 = dma.done [#allocation12], 4096
    $region57: #{tpu_custom_call.1} parent=1 // pred_fallthru
      _
    %v111 = vld [vmem:[#allocation2] sm:$0xff]
    %v112 = vld [vmem:[#allocation2 + $0x8] sm:$0xff]
    %v113 = vld [vmem:[#allocation5] sm:$0xff]
    %v114 = vld [vmem:[#allocation5 + $0x8] sm:$0xff]
    %v115 = vld [vmem:[#allocation8] sm:$0x1f]
    %v116 = vld [vmem:[#allocation7] sm:$0xff]
    %v117 = vld [vmem:[#allocation7 + $0x8] sm:$0xff]
    %v118 = vld [vmem:[#allocation7 + $0x10] sm:$0xff]
    %v119 = vld [vmem:[#allocation7 + $0x18] sm:$0xff]
    %v120 = vld [vmem:[%s3] sm:$0x1]
    %vm121 = vcmask 261120
    %v122 = vsel %vm121, %v111, 0.0
    %123 = vadd.xlane.f32.xlu0 %v122
    %v124 = vpop.xlane.xlu0 %123
    %v125 = vsel %vm121, %v112, 0.0
    %126 = vadd.xlane.f32.xlu0 %v125
    %v127 = vpop.xlane.xlu0 %126
    %v128 = vrcp.pop 32.0
    %v129 = vmul.f32 %v124, %v128
    %v130 = vmul.f32 %v127, %v128
    %v131 = vsub.f32 %v111, %v129
    %v132 = vsub.f32 %v112, %v130
    %v133 = vmul.f32 %v131, %v131
    %v134 = vmul.f32 %v132, %v132
    %v135 = vsel %vm121, %v133, 0.0
    %136 = vadd.xlane.f32.xlu0 %v135
    %v137 = vpop.xlane.xlu0 %136
    %v138 = vsel %vm121, %v134, 0.0
    %139 = vadd.xlane.f32.xlu0 %v138
    %v140 = vpop.xlane.xlu0 %139
    %v141 = vmul.f32 %v137, 0.032258064
    %v142 = vmul.f32 %v140, 0.032258064
    %v143 = vrsqrt.pop %v141
    %v144 = vmul.f32 %v141, %v143
    %vm145 = vcmp.eq.f32.partialorder %v141, inf
    %v146 = vsel %vm145, %v141, %v144
    %vm147 = vcmp.eq.f32.partialorder %v141, 0.0
    %v148 = vand.u32 %v141, 2147483648
    %v149 = vsel %vm147, %v148, %v146
    %v150 = vrsqrt.pop %v142
    %v151 = vmul.f32 %v142, %v150
    %vm152 = vcmp.eq.f32.partialorder %v142, inf
    %v153 = vsel %vm152, %v142, %v151
    %vm154 = vcmp.eq.f32.partialorder %v142, 0.0
    %v155 = vand.u32 %v142, 2147483648
    %v156 = vsel %vm154, %v155, %v153
    %v157 = vadd.f32 %v149, 1e-06
    %v158 = vadd.f32 %v156, 1e-06
    %v159 = vrcp.pop %v157
    %v160 = vrcp.pop %v158
    %v161 = vlaneseq
    %v162 = vshrl.u32 %v161, 7
    %v163 = vsub.s32 0, %v162
    %v164 = vrot.slane %v115, %v163
    %v165 = vmul.f32 %v164, %v131
    %v166 = vmul.f32 %v164, %v132
    %v167 = vmul.f32 %v165, %v159
    %v168 = vmul.f32 %v166, %v160
    %v169 = vlaneseq
    %v170 = vshrl.u32 %v169, 7
    %v171 = vsub.s32 1, %v170
    %v172 = vrot.slane %v115, %v171
    %v173 = vadd.f32 %v167, %v172
    %v174 = vadd.f32 %v168, %v172
    %v176 = vlaneseq
    %v177 = vshrl.u32 %v176, 7
    %v178 = vsub.s32 0, %v177
    %v179 = vrot.slane %v120, %v178
    %v182 = vsel %vm121, %v173, 0
    %v185 = vsel %vm121, %v174, 0
    %187 = vmatprep.subr.mxu0 0.0
    %188 = vmatpush1.msra.mxu0 %v116
    %189 = vmatprep.subr.mxu0 0.0
    %190 = vmatpush1.msra.mxu0 %v117
    %191 = vmatprep.subr.mxu0 0.0
    %192 = vmatpush1.msra.mxu0 %v118
    %193 = vmatprep.subr.mxu0 0.0
    %194 = vmatpush1.msra.mxu0 %v119
    %195 = vmatprep.subr.mxu0 0.0
    %196 = vmatpush1.msra.mxu0 0.0
    %197 = vmatprep.subr.mxu0 0.0
    %198 = vmatpush1.msra.mxu0 0.0
    %199 = vmatprep.subr.mxu0 0.0
    %200 = vmatpush1.msra.mxu0 0.0
    %201 = vmatprep.subr.mxu0 0.0
    %202 = vmatpush1.msra.mxu0 0.0
    %203 = vmatprep.subr.mxu0 0.0
    %204 = vmatpush1.msra.mxu0 0.0
    %205 = vmatprep.subr.mxu0 0.0
    %206 = vmatpush1.msra.mxu0 0.0
    %207 = vmatprep.subr.mxu0 0.0
    %208 = vmatpush1.msra.mxu0 0.0
    %209 = vmatprep.subr.mxu0 0.0
    %210 = vmatpush1.msra.mxu0 0.0
    %211 = vmatprep.subr.mxu0 0.0
    %212 = vmatpush1.msra.mxu0 0.0
    %213 = vmatprep.subr.mxu0 0.0
    %214 = vmatpush1.msra.mxu0 0.0
    %215 = vmatprep.subr.mxu0 0.0
    %216 = vmatpush1.msra.mxu0 0.0
    %217 = vmatprep.subr.mxu0 0.0
    %218 = vmatpush1.msra.mxu0 0.0
    %219 = vmatprep.subr.mxu0 0.0
    %220 = vmatpush1.msra.mxu0 0.0
    %221 = vmatprep.subr.mxu0 0.0
    %222 = vmatpush1.msra.mxu0 0.0
    %223 = vmatprep.subr.mxu0 0.0
    %224 = vmatpush1.msra.mxu0 0.0
    %225 = vmatprep.subr.mxu0 0.0
    %226 = vmatpush1.msra.mxu0 0.0
    %227 = vmatprep.subr.mxu0 0.0
    %228 = vmatpush1.msra.mxu0 0.0
    %229 = vmatprep.subr.mxu0 0.0
    %230 = vmatpush1.msra.mxu0 0.0
    %231 = vmatprep.subr.mxu0 0.0
    %232 = vmatpush1.msra.mxu0 0.0
    %233 = vmatprep.subr.mxu0 0.0
    %234 = vmatpush1.msra.mxu0 0.0
    %235 = vmatprep.subr.mxu0 0.0
    %236 = vmatpush1.msra.mxu0 0.0
    %237 = vmatprep.subr.mxu0 0.0
    %238 = vmatpush1.msra.mxu0 0.0
    %239 = vmatprep.subr.mxu0 0.0
    %240 = vmatpush1.msra.mxu0 0.0
    %241 = vmatprep.subr.mxu0 0.0
    %242 = vmatpush1.msra.mxu0 0.0
    %243 = vmatprep.subr.mxu0 0.0
    %244 = vmatpush1.msra.mxu0 0.0
    %245 = vmatprep.subr.mxu0 0.0
    %246 = vmatpush1.msra.mxu0 0.0
    %247 = vmatprep.subr.mxu0 0.0
    %248 = vmatpush1.msra.mxu0 0.0
    %249 = vmatprep.subr.mxu0 0.0
    %250 = vmatpush1.msra.mxu0 0.0
    %251 = vmatprep.mubr.f32.mxu0 0.0
    %252 = vmatmul.mubr.f32.gmra.mrb[0].mxu0 %v182
    %v253 = vpop.f32.mrb[0].mxu0
    %v254 = vadd.f32 %v179, %v253
    %v255 = vpop.f32.mrb[0].mxu0
    %256 = vmatprep.mubr.f32.mxu0 0.0
    %257 = vmatmul.mubr.f32.gmra.mrb[0].mxu0 %v185
    %v258 = vpop.f32.mrb[0].mxu0
    %v259 = vadd.f32 %v179, %v258
    %v260 = vpop.f32.mrb[0].mxu0
    %261 = vdwg.mxu0
    %264 = vrot.lane.b32.xlu0 %v254, 120
    %v265 = vpop.permute.xlu0 %264
    %266 = vrot.lane.b32.xlu0 %v259, 120
    %v267 = vpop.permute.xlu0 %266
    %268 = vrot.lane.b32.xlu0 %v254, 112
    %v269 = vpop.permute.xlu0 %268
    %270 = vrot.lane.b32.xlu0 %v259, 112
    %v271 = vpop.permute.xlu0 %270
    %272 = vrot.lane.b32.xlu0 %v254, 104
    %v273 = vpop.permute.xlu0 %272
    %274 = vrot.lane.b32.xlu0 %v259, 104
    %v275 = vpop.permute.xlu0 %274
    %276 = vrot.lane.b32.xlu0 %v254, 96
    %v277 = vpop.permute.xlu0 %276
    %278 = vrot.lane.b32.xlu0 %v259, 96
    %v279 = vpop.permute.xlu0 %278
    %vm280 = vcmask 64512
    %v281 = vsel %vm280, %v254, 0
    %v283 = vsel %vm280, %v259, 0
    %v285 = vsel %vm280, %v277, 0
    %v287 = vsel %vm280, %v279, 0
    %289 = vmatprep.subr.mxu0 0.0
    %290 = vmatpush1.xpose.msra.mxu0 %v285
    %291 = vmatprep.subr.mxu0 0.0
    %292 = vmatpush1.xpose.msra.mxu0 %v287
    %293 = vmatprep.subr.mxu0 0.0
    %294 = vmatpush1.xpose.msra.mxu0 0.0
    %295 = vmatprep.subr.mxu0 0.0
    %296 = vmatpush1.xpose.msra.mxu0 0.0
    %297 = vmatprep.subr.mxu0 0.0
    %298 = vmatpush1.xpose.msra.mxu0 0.0
    %299 = vmatprep.subr.mxu0 0.0
    %300 = vmatpush1.xpose.msra.mxu0 0.0
    %301 = vmatprep.subr.mxu0 0.0
    %302 = vmatpush1.xpose.msra.mxu0 0.0
    %303 = vmatprep.subr.mxu0 0.0
    %304 = vmatpush1.xpose.msra.mxu0 0.0
    %305 = vmatprep.subr.mxu0 0.0
    %306 = vmatpush1.xpose.msra.mxu0 0.0
    %307 = vmatprep.subr.mxu0 0.0
    %308 = vmatpush1.xpose.msra.mxu0 0.0
    %309 = vmatprep.subr.mxu0 0.0
    %310 = vmatpush1.xpose.msra.mxu0 0.0
    %311 = vmatprep.subr.mxu0 0.0
    %312 = vmatpush1.xpose.msra.mxu0 0.0
    %313 = vmatprep.subr.mxu0 0.0
    %314 = vmatpush1.xpose.msra.mxu0 0.0
    %315 = vmatprep.subr.mxu0 0.0
    %316 = vmatpush1.xpose.msra.mxu0 0.0
    %317 = vmatprep.subr.mxu0 0.0
    %318 = vmatpush1.xpose.msra.mxu0 0.0
    %319 = vmatprep.subr.mxu0 0.0
    %320 = vmatpush1.xpose.msra.mxu0 0.0
    %321 = vmatprep.subr.mxu0 0.0
    %322 = vmatpush1.xpose.msra.mxu0 0.0
    %323 = vmatprep.subr.mxu0 0.0
    %324 = vmatpush1.xpose.msra.mxu0 0.0
    %325 = vmatprep.subr.mxu0 0.0
    %326 = vmatpush1.xpose.msra.mxu0 0.0
    %327 = vmatprep.subr.mxu0 0.0
    %328 = vmatpush1.xpose.msra.mxu0 0.0
    %329 = vmatprep.subr.mxu0 0.0
    %330 = vmatpush1.xpose.msra.mxu0 0.0
    %331 = vmatprep.subr.mxu0 0.0
    %332 = vmatpush1.xpose.msra.mxu0 0.0
    %333 = vmatprep.subr.mxu0 0.0
    %334 = vmatpush1.xpose.msra.mxu0 0.0
    %335 = vmatprep.subr.mxu0 0.0
    %336 = vmatpush1.xpose.msra.mxu0 0.0
    %337 = vmatprep.subr.mxu0 0.0
    %338 = vmatpush1.xpose.msra.mxu0 0.0
    %339 = vmatprep.subr.mxu0 0.0
    %340 = vmatpush1.xpose.msra.mxu0 0.0
    %341 = vmatprep.subr.mxu0 0.0
    %342 = vmatpush1.xpose.msra.mxu0 0.0
    %343 = vmatprep.subr.mxu0 0.0
    %344 = vmatpush1.xpose.msra.mxu0 0.0
    %345 = vmatprep.subr.mxu0 0.0
    %346 = vmatpush1.xpose.msra.mxu0 0.0
    %347 = vmatprep.subr.mxu0 0.0
    %348 = vmatpush1.xpose.msra.mxu0 0.0
    %349 = vmatprep.subr.mxu0 0.0
    %350 = vmatpush1.xpose.msra.mxu0 0.0
    %351 = vmatprep.subr.mxu0 0.0
    %352 = vmatpush1.xpose.msra.mxu0 0.0
    %353 = vmatprep.mubr.f32.mxu0 0.0
    %354 = vmatmul.mubr.f32.gmra.mrb[0].mxu0 %v281
    %v355 = vpop.f32.mrb[0].mxu0
    %v356 = vadd.f32 0.0, %v355
    %v357 = vpop.f32.mrb[0].mxu0
    %358 = vmatprep.mubr.f32.mxu0 0.0
    %359 = vmatmul.mubr.f32.gmra.mrb[0].mxu0 %v283
    %v360 = vpop.f32.mrb[0].mxu0
    %v361 = vadd.f32 0.0, %v360
    %v362 = vpop.f32.mrb[0].mxu0
    %363 = vdwg.mxu0
    %364 = vrot.lane.b32.xlu0 %v265, 96
    %v365 = vpop.permute.xlu0 %364
    %366 = vrot.lane.b32.xlu0 %v267, 96
    %v367 = vpop.permute.xlu0 %366
    %v368 = vsel %vm280, %v265, 0
    %v370 = vsel %vm280, %v267, 0
    %v372 = vsel %vm280, %v365, 0
    %v374 = vsel %vm280, %v367, 0
    %376 = vmatprep.subr.mxu0 0.0
    %377 = vmatpush1.xpose.msra.mxu0 %v372
    %378 = vmatprep.subr.mxu0 0.0
    %379 = vmatpush1.xpose.msra.mxu0 %v374
    %380 = vmatprep.subr.mxu0 0.0
    %381 = vmatpush1.xpose.msra.mxu0 0.0
    %382 = vmatprep.subr.mxu0 0.0
    %383 = vmatpush1.xpose.msra.mxu0 0.0
    %384 = vmatprep.subr.mxu0 0.0
    %385 = vmatpush1.xpose.msra.mxu0 0.0
    %386 = vmatprep.subr.mxu0 0.0
    %387 = vmatpush1.xpose.msra.mxu0 0.0
    %388 = vmatprep.subr.mxu0 0.0
    %389 = vmatpush1.xpose.msra.mxu0 0.0
    %390 = vmatprep.subr.mxu0 0.0
    %391 = vmatpush1.xpose.msra.mxu0 0.0
    %392 = vmatprep.subr.mxu0 0.0
    %393 = vmatpush1.xpose.msra.mxu0 0.0
    %394 = vmatprep.subr.mxu0 0.0
    %395 = vmatpush1.xpose.msra.mxu0 0.0
    %396 = vmatprep.subr.mxu0 0.0
    %397 = vmatpush1.xpose.msra.mxu0 0.0
    %398 = vmatprep.subr.mxu0 0.0
    %399 = vmatpush1.xpose.msra.mxu0 0.0
    %400 = vmatprep.subr.mxu0 0.0
    %401 = vmatpush1.xpose.msra.mxu0 0.0
    %402 = vmatprep.subr.mxu0 0.0
    %403 = vmatpush1.xpose.msra.mxu0 0.0
    %404 = vmatprep.subr.mxu0 0.0
    %405 = vmatpush1.xpose.msra.mxu0 0.0
    %406 = vmatprep.subr.mxu0 0.0
    %407 = vmatpush1.xpose.msra.mxu0 0.0
    %408 = vmatprep.subr.mxu0 0.0
    %409 = vmatpush1.xpose.msra.mxu0 0.0
    %410 = vmatprep.subr.mxu0 0.0
    %411 = vmatpush1.xpose.msra.mxu0 0.0
    %412 = vmatprep.subr.mxu0 0.0
    %413 = vmatpush1.xpose.msra.mxu0 0.0
    %414 = vmatprep.subr.mxu0 0.0
    %415 = vmatpush1.xpose.msra.mxu0 0.0
    %416 = vmatprep.subr.mxu0 0.0
    %417 = vmatpush1.xpose.msra.mxu0 0.0
    %418 = vmatprep.subr.mxu0 0.0
    %419 = vmatpush1.xpose.msra.mxu0 0.0
    %420 = vmatprep.subr.mxu0 0.0
    %421 = vmatpush1.xpose.msra.mxu0 0.0
    %422 = vmatprep.subr.mxu0 0.0
    %423 = vmatpush1.xpose.msra.mxu0 0.0
    %424 = vmatprep.subr.mxu0 0.0
    %425 = vmatpush1.xpose.msra.mxu0 0.0
    %426 = vmatprep.subr.mxu0 0.0
    %427 = vmatpush1.xpose.msra.mxu0 0.0
    %428 = vmatprep.subr.mxu0 0.0
    %429 = vmatpush1.xpose.msra.mxu0 0.0
    %430 = vmatprep.subr.mxu0 0.0
    %431 = vmatpush1.xpose.msra.mxu0 0.0
    %432 = vmatprep.subr.mxu0 0.0
    %433 = vmatpush1.xpose.msra.mxu0 0.0
    %434 = vmatprep.subr.mxu0 0.0
    %435 = vmatpush1.xpose.msra.mxu0 0.0
    %436 = vmatprep.subr.mxu0 0.0
    %437 = vmatpush1.xpose.msra.mxu0 0.0
    %438 = vmatprep.subr.mxu0 0.0
    %439 = vmatpush1.xpose.msra.mxu0 0.0
    %440 = vmatprep.mubr.f32.mxu0 0.0
    %441 = vmatmul.mubr.f32.gmra.mrb[0].mxu0 %v368
    %v442 = vpop.f32.mrb[0].mxu0
    %v443 = vadd.f32 0.0, %v442
    %v444 = vpop.f32.mrb[0].mxu0
    %445 = vmatprep.mubr.f32.mxu0 0.0
    %446 = vmatmul.mubr.f32.gmra.mrb[0].mxu0 %v370
    %v447 = vpop.f32.mrb[0].mxu0
    %v448 = vadd.f32 0.0, %v447
    %v449 = vpop.f32.mrb[0].mxu0
    %450 = vdwg.mxu0
    %451 = vrot.lane.b32.xlu0 %v269, 96
    %v452 = vpop.permute.xlu0 %451
    %453 = vrot.lane.b32.xlu0 %v271, 96
    %v454 = vpop.permute.xlu0 %453
    %v455 = vsel %vm280, %v269, 0
    %v457 = vsel %vm280, %v271, 0
    %v459 = vsel %vm280, %v452, 0
    %v461 = vsel %vm280, %v454, 0
    %463 = vmatprep.subr.mxu0 0.0
    %464 = vmatpush1.xpose.msra.mxu0 %v459
    %465 = vmatprep.subr.mxu0 0.0
    %466 = vmatpush1.xpose.msra.mxu0 %v461
    %467 = vmatprep.subr.mxu0 0.0
    %468 = vmatpush1.xpose.msra.mxu0 0.0
    %469 = vmatprep.subr.mxu0 0.0
    %470 = vmatpush1.xpose.msra.mxu0 0.0
    %471 = vmatprep.subr.mxu0 0.0
    %472 = vmatpush1.xpose.msra.mxu0 0.0
    %473 = vmatprep.subr.mxu0 0.0
    %474 = vmatpush1.xpose.msra.mxu0 0.0
    %475 = vmatprep.subr.mxu0 0.0
    %476 = vmatpush1.xpose.msra.mxu0 0.0
    %477 = vmatprep.subr.mxu0 0.0
    %478 = vmatpush1.xpose.msra.mxu0 0.0
    %479 = vmatprep.subr.mxu0 0.0
    %480 = vmatpush1.xpose.msra.mxu0 0.0
    %481 = vmatprep.subr.mxu0 0.0
    %482 = vmatpush1.xpose.msra.mxu0 0.0
    %483 = vmatprep.subr.mxu0 0.0
    %484 = vmatpush1.xpose.msra.mxu0 0.0
    %485 = vmatprep.subr.mxu0 0.0
    %486 = vmatpush1.xpose.msra.mxu0 0.0
    %487 = vmatprep.subr.mxu0 0.0
    %488 = vmatpush1.xpose.msra.mxu0 0.0
    %489 = vmatprep.subr.mxu0 0.0
    %490 = vmatpush1.xpose.msra.mxu0 0.0
    %491 = vmatprep.subr.mxu0 0.0
    %492 = vmatpush1.xpose.msra.mxu0 0.0
    %493 = vmatprep.subr.mxu0 0.0
    %494 = vmatpush1.xpose.msra.mxu0 0.0
    %495 = vmatprep.subr.mxu0 0.0
    %496 = vmatpush1.xpose.msra.mxu0 0.0
    %497 = vmatprep.subr.mxu0 0.0
    %498 = vmatpush1.xpose.msra.mxu0 0.0
    %499 = vmatprep.subr.mxu0 0.0
    %500 = vmatpush1.xpose.msra.mxu0 0.0
    %501 = vmatprep.subr.mxu0 0.0
    %502 = vmatpush1.xpose.msra.mxu0 0.0
    %503 = vmatprep.subr.mxu0 0.0
    %504 = vmatpush1.xpose.msra.mxu0 0.0
    %505 = vmatprep.subr.mxu0 0.0
    %506 = vmatpush1.xpose.msra.mxu0 0.0
    %507 = vmatprep.subr.mxu0 0.0
    %508 = vmatpush1.xpose.msra.mxu0 0.0
    %509 = vmatprep.subr.mxu0 0.0
    %510 = vmatpush1.xpose.msra.mxu0 0.0
    %511 = vmatprep.subr.mxu0 0.0
    %512 = vmatpush1.xpose.msra.mxu0 0.0
    %513 = vmatprep.subr.mxu0 0.0
    %514 = vmatpush1.xpose.msra.mxu0 0.0
    %515 = vmatprep.subr.mxu0 0.0
    %516 = vmatpush1.xpose.msra.mxu0 0.0
    %517 = vmatprep.subr.mxu0 0.0
    %518 = vmatpush1.xpose.msra.mxu0 0.0
    %519 = vmatprep.subr.mxu0 0.0
    %520 = vmatpush1.xpose.msra.mxu0 0.0
    %521 = vmatprep.subr.mxu0 0.0
    %522 = vmatpush1.xpose.msra.mxu0 0.0
    %523 = vmatprep.subr.mxu0 0.0
    %524 = vmatpush1.xpose.msra.mxu0 0.0
    %525 = vmatprep.subr.mxu0 0.0
    %526 = vmatpush1.xpose.msra.mxu0 0.0
    %527 = vmatprep.mubr.f32.mxu0 0.0
    %528 = vmatmul.mubr.f32.gmra.mrb[0].mxu0 %v455
    %v529 = vpop.f32.mrb[0].mxu0
    %v530 = vadd.f32 0.0, %v529
    %v531 = vpop.f32.mrb[0].mxu0
    %532 = vmatprep.mubr.f32.mxu0 0.0
    %533 = vmatmul.mubr.f32.gmra.mrb[0].mxu0 %v457
    %v534 = vpop.f32.mrb[0].mxu0
    %v535 = vadd.f32 0.0, %v534
    %v536 = vpop.f32.mrb[0].mxu0
    %537 = vdwg.mxu0
    %538 = vrot.lane.b32.xlu0 %v273, 96
    %v539 = vpop.permute.xlu0 %538
    %540 = vrot.lane.b32.xlu0 %v275, 96
    %v541 = vpop.permute.xlu0 %540
    %v542 = vsel %vm280, %v273, 0
    %v544 = vsel %vm280, %v275, 0
    %v546 = vsel %vm280, %v539, 0
    %v548 = vsel %vm280, %v541, 0
    %550 = vmatprep.subr.mxu0 0.0
    %551 = vmatpush1.xpose.msra.mxu0 %v546
    %552 = vmatprep.subr.mxu0 0.0
    %553 = vmatpush1.xpose.msra.mxu0 %v548
    %554 = vmatprep.subr.mxu0 0.0
    %555 = vmatpush1.xpose.msra.mxu0 0.0
    %556 = vmatprep.subr.mxu0 0.0
    %557 = vmatpush1.xpose.msra.mxu0 0.0
    %558 = vmatprep.subr.mxu0 0.0
    %559 = vmatpush1.xpose.msra.mxu0 0.0
    %560 = vmatprep.subr.mxu0 0.0
    %561 = vmatpush1.xpose.msra.mxu0 0.0
    %562 = vmatprep.subr.mxu0 0.0
    %563 = vmatpush1.xpose.msra.mxu0 0.0
    %564 = vmatprep.subr.mxu0 0.0
    %565 = vmatpush1.xpose.msra.mxu0 0.0
    %566 = vmatprep.subr.mxu0 0.0
    %567 = vmatpush1.xpose.msra.mxu0 0.0
    %568 = vmatprep.subr.mxu0 0.0
    %569 = vmatpush1.xpose.msra.mxu0 0.0
    %570 = vmatprep.subr.mxu0 0.0
    %571 = vmatpush1.xpose.msra.mxu0 0.0
    %572 = vmatprep.subr.mxu0 0.0
    %573 = vmatpush1.xpose.msra.mxu0 0.0
    %574 = vmatprep.subr.mxu0 0.0
    %575 = vmatpush1.xpose.msra.mxu0 0.0
    %576 = vmatprep.subr.mxu0 0.0
    %577 = vmatpush1.xpose.msra.mxu0 0.0
    %578 = vmatprep.subr.mxu0 0.0
    %579 = vmatpush1.xpose.msra.mxu0 0.0
    %580 = vmatprep.subr.mxu0 0.0
    %581 = vmatpush1.xpose.msra.mxu0 0.0
    %582 = vmatprep.subr.mxu0 0.0
    %583 = vmatpush1.xpose.msra.mxu0 0.0
    %584 = vmatprep.subr.mxu0 0.0
    %585 = vmatpush1.xpose.msra.mxu0 0.0
    %586 = vmatprep.subr.mxu0 0.0
    %587 = vmatpush1.xpose.msra.mxu0 0.0
    %588 = vmatprep.subr.mxu0 0.0
    %589 = vmatpush1.xpose.msra.mxu0 0.0
    %590 = vmatprep.subr.mxu0 0.0
    %591 = vmatpush1.xpose.msra.mxu0 0.0
    %592 = vmatprep.subr.mxu0 0.0
    %593 = vmatpush1.xpose.msra.mxu0 0.0
    %594 = vmatprep.subr.mxu0 0.0
    %595 = vmatpush1.xpose.msra.mxu0 0.0
    %596 = vmatprep.subr.mxu0 0.0
    %597 = vmatpush1.xpose.msra.mxu0 0.0
    %598 = vmatprep.subr.mxu0 0.0
    %599 = vmatpush1.xpose.msra.mxu0 0.0
    %600 = vmatprep.subr.mxu0 0.0
    %601 = vmatpush1.xpose.msra.mxu0 0.0
    %602 = vmatprep.subr.mxu0 0.0
    %603 = vmatpush1.xpose.msra.mxu0 0.0
    %604 = vmatprep.subr.mxu0 0.0
    %605 = vmatpush1.xpose.msra.mxu0 0.0
    %606 = vmatprep.subr.mxu0 0.0
    %607 = vmatpush1.xpose.msra.mxu0 0.0
    %608 = vmatprep.subr.mxu0 0.0
    %609 = vmatpush1.xpose.msra.mxu0 0.0
    %610 = vmatprep.subr.mxu0 0.0
    %611 = vmatpush1.xpose.msra.mxu0 0.0
    %612 = vmatprep.subr.mxu0 0.0
    %613 = vmatpush1.xpose.msra.mxu0 0.0
    %614 = vmatprep.mubr.f32.mxu0 0.0
    %615 = vmatmul.mubr.f32.gmra.mrb[0].mxu0 %v542
    %v616 = vpop.f32.mrb[0].mxu0
    %v617 = vadd.f32 0.0, %v616
    %v618 = vpop.f32.mrb[0].mxu0
    %619 = vmatprep.mubr.f32.mxu0 0.0
    %620 = vmatmul.mubr.f32.gmra.mrb[0].mxu0 %v544
    %v621 = vpop.f32.mrb[0].mxu0
    %v622 = vadd.f32 0.0, %v621
    %v623 = vpop.f32.mrb[0].mxu0
    %624 = vdwg.mxu0
    %v625 = vmul.f32 %v356, 0.35355338
    %v626 = vmul.f32 %v361, 0.35355338
    %v627 = vmul.f32 %v443, 0.35355338
    %v628 = vmul.f32 %v448, 0.35355338
    %v629 = vmul.f32 %v530, 0.35355338
    %v630 = vmul.f32 %v535, 0.35355338
    %v631 = vmul.f32 %v617, 0.35355338
    %v632 = vmul.f32 %v622, 0.35355338
    %v633 = vadd.f32 %v625, %v113
    %v634 = vadd.f32 %v626, %v114
    %v635 = vadd.f32 %v627, %v113
    %v636 = vadd.f32 %v628, %v114
    %v637 = vadd.f32 %v629, %v113
    %v638 = vadd.f32 %v630, %v114
    %v639 = vadd.f32 %v631, %v113
    %v640 = vadd.f32 %v632, %v114
    %vm641 = vcmask 130048
    %v642 = vsel %vm641, %v633, -inf
    %643 = vmax.xlane.f32.xlu0 %v642
    %v644 = vpop.xlane.xlu0 %643
    %v645 = vsel %vm641, %v634, -inf
    %646 = vmax.xlane.f32.xlu0 %v645
    %v647 = vpop.xlane.xlu0 %646
    %v648 = vsel %vm641, %v635, -inf
    %649 = vmax.xlane.f32.xlu0 %v648
    %v650 = vpop.xlane.xlu0 %649
    %v651 = vsel %vm641, %v636, -inf
    %652 = vmax.xlane.f32.xlu0 %v651
    %v653 = vpop.xlane.xlu0 %652
    %v654 = vsel %vm641, %v637, -inf
    %655 = vmax.xlane.f32.xlu0 %v654
    %v656 = vpop.xlane.xlu0 %655
    %v657 = vsel %vm641, %v638, -inf
    %658 = vmax.xlane.f32.xlu0 %v657
    %v659 = vpop.xlane.xlu0 %658
    %v660 = vsel %vm641, %v639, -inf
    %661 = vmax.xlane.f32.xlu0 %v660
    %v662 = vpop.xlane.xlu0 %661
    %v663 = vsel %vm641, %v640, -inf
    %664 = vmax.xlane.f32.xlu0 %v663
    %v665 = vpop.xlane.xlu0 %664
    %v666 = vsub.f32 %v633, %v644
    %v667 = vsub.f32 %v634, %v647
    %v668 = vsub.f32 %v635, %v650
    %v669 = vsub.f32 %v636, %v653
    %v670 = vsub.f32 %v637, %v656
    %v671 = vsub.f32 %v638, %v659
    %v672 = vsub.f32 %v639, %v662
    %v673 = vsub.f32 %v640, %v665
    %v674 = vmul.f32 %v666, 1.442695
    %v675 = vpow.pop %v674
    %v676 = vmul.f32 %v667, 1.442695
    %v677 = vpow.pop %v676
    %v678 = vmul.f32 %v668, 1.442695
    %v679 = vpow.pop %v678
    %v680 = vmul.f32 %v669, 1.442695
    %v681 = vpow.pop %v680
    %v682 = vmul.f32 %v670, 1.442695
    %v683 = vpow.pop %v682
    %v684 = vmul.f32 %v671, 1.442695
    %v685 = vpow.pop %v684
    %v686 = vmul.f32 %v672, 1.442695
    %v687 = vpow.pop %v686
    %v688 = vmul.f32 %v673, 1.442695
    %v689 = vpow.pop %v688
    %v690 = vsel %vm641, %v675, 0.0
    %691 = vadd.xlane.f32.xlu0 %v690
    %v692 = vpop.xlane.xlu0 %691
    %v693 = vsel %vm641, %v677, 0.0
    %694 = vadd.xlane.f32.xlu0 %v693
    %v695 = vpop.xlane.xlu0 %694
    %v696 = vsel %vm641, %v679, 0.0
    %697 = vadd.xlane.f32.xlu0 %v696
    %v698 = vpop.xlane.xlu0 %697
    %v699 = vsel %vm641, %v681, 0.0
    %700 = vadd.xlane.f32.xlu0 %v699
    %v701 = vpop.xlane.xlu0 %700
    %v702 = vsel %vm641, %v683, 0.0
    %703 = vadd.xlane.f32.xlu0 %v702
    %v704 = vpop.xlane.xlu0 %703
    %v705 = vsel %vm641, %v685, 0.0
    %706 = vadd.xlane.f32.xlu0 %v705
    %v707 = vpop.xlane.xlu0 %706
    %v708 = vsel %vm641, %v687, 0.0
    %709 = vadd.xlane.f32.xlu0 %v708
    %v710 = vpop.xlane.xlu0 %709
    %v711 = vsel %vm641, %v689, 0.0
    %712 = vadd.xlane.f32.xlu0 %v711
    %v713 = vpop.xlane.xlu0 %712
    %v714 = vrcp.pop %v692
    %v715 = vrcp.pop %v695
    %v716 = vrcp.pop %v698
    %v717 = vrcp.pop %v701
    %v718 = vrcp.pop %v704
    %v719 = vrcp.pop %v707
    %v720 = vrcp.pop %v710
    %v721 = vrcp.pop %v713
    %v722 = vmul.f32 %v675, %v714
    %v723 = vmul.f32 %v677, %v715
    %v724 = vmul.f32 %v679, %v716
    %v725 = vmul.f32 %v681, %v717
    %v726 = vmul.f32 %v683, %v718
    %v727 = vmul.f32 %v685, %v719
    %v728 = vmul.f32 %v687, %v720
    %v729 = vmul.f32 %v689, %v721
    %730 = vrot.lane.b32.xlu0 %v254, 64
    %v731 = vpop.permute.xlu0 %730
    %732 = vrot.lane.b32.xlu0 %v259, 64
    %v733 = vpop.permute.xlu0 %732
    %v737 = vsel %vm641, %v722, 0
    %v740 = vsel %vm641, %v723, 0
    %742 = vmatprep.subr.mxu0 0.0
    %743 = vmatpush1.msra.mxu0 %v731
    %744 = vmatprep.subr.mxu0 0.0
    %745 = vmatpush1.msra.mxu0 %v733
    %746 = vmatprep.subr.mxu0 0.0
    %747 = vmatpush1.msra.mxu0 0.0
    %748 = vmatprep.subr.mxu0 0.0
    %749 = vmatpush1.msra.mxu0 0.0
    %750 = vmatprep.subr.mxu0 0.0
    %751 = vmatpush1.msra.mxu0 0.0
    %752 = vmatprep.subr.mxu0 0.0
    %753 = vmatpush1.msra.mxu0 0.0
    %754 = vmatprep.subr.mxu0 0.0
    %755 = vmatpush1.msra.mxu0 0.0
    %756 = vmatprep.subr.mxu0 0.0
    %757 = vmatpush1.msra.mxu0 0.0
    %758 = vmatprep.subr.mxu0 0.0
    %759 = vmatpush1.msra.mxu0 0.0
    %760 = vmatprep.subr.mxu0 0.0
    %761 = vmatpush1.msra.mxu0 0.0
    %762 = vmatprep.subr.mxu0 0.0
    %763 = vmatpush1.msra.mxu0 0.0
    %764 = vmatprep.subr.mxu0 0.0
    %765 = vmatpush1.msra.mxu0 0.0
    %766 = vmatprep.subr.mxu0 0.0
    %767 = vmatpush1.msra.mxu0 0.0
    %768 = vmatprep.subr.mxu0 0.0
    %769 = vmatpush1.msra.mxu0 0.0
    %770 = vmatprep.subr.mxu0 0.0
    %771 = vmatpush1.msra.mxu0 0.0
    %772 = vmatprep.subr.mxu0 0.0
    %773 = vmatpush1.msra.mxu0 0.0
    %774 = vmatprep.subr.mxu0 0.0
    %775 = vmatpush1.msra.mxu0 0.0
    %776 = vmatprep.subr.mxu0 0.0
    %777 = vmatpush1.msra.mxu0 0.0
    %778 = vmatprep.subr.mxu0 0.0
    %779 = vmatpush1.msra.mxu0 0.0
    %780 = vmatprep.subr.mxu0 0.0
    %781 = vmatpush1.msra.mxu0 0.0
    %782 = vmatprep.subr.mxu0 0.0
    %783 = vmatpush1.msra.mxu0 0.0
    %784 = vmatprep.subr.mxu0 0.0
    %785 = vmatpush1.msra.mxu0 0.0
    %786 = vmatprep.subr.mxu0 0.0
    %787 = vmatpush1.msra.mxu0 0.0
    %788 = vmatprep.subr.mxu0 0.0
    %789 = vmatpush1.msra.mxu0 0.0
    %790 = vmatprep.subr.mxu0 0.0
    %791 = vmatpush1.msra.mxu0 0.0
    %792 = vmatprep.subr.mxu0 0.0
    %793 = vmatpush1.msra.mxu0 0.0
    %794 = vmatprep.subr.mxu0 0.0
    %795 = vmatpush1.msra.mxu0 0.0
    %796 = vmatprep.subr.mxu0 0.0
    %797 = vmatpush1.msra.mxu0 0.0
    %798 = vmatprep.subr.mxu0 0.0
    %799 = vmatpush1.msra.mxu0 0.0
    %800 = vmatprep.subr.mxu0 0.0
    %801 = vmatpush1.msra.mxu0 0.0
    %802 = vmatprep.subr.mxu0 0.0
    %803 = vmatpush1.msra.mxu0 0.0
    %804 = vmatprep.subr.mxu0 0.0
    %805 = vmatpush1.msra.mxu0 0.0
    %806 = vmatprep.mubr.f32.mxu0 0.0
    %807 = vmatmul.mubr.f32.gmra.mrb[0].mxu0 %v737
    %v808 = vpop.f32.mrb[0].mxu0
    %v809 = vadd.f32 0.0, %v808
    %v810 = vpop.f32.mrb[0].mxu0
    %811 = vmatprep.mubr.f32.mxu0 0.0
    %812 = vmatmul.mubr.f32.gmra.mrb[0].mxu0 %v740
    %v813 = vpop.f32.mrb[0].mxu0
    %v814 = vadd.f32 0.0, %v813
    %v815 = vpop.f32.mrb[0].mxu0
    %816 = vdwg.mxu0
    %817 = vrot.lane.b32.xlu0 %v265, 64
    %v818 = vpop.permute.xlu0 %817
    %819 = vrot.lane.b32.xlu0 %v267, 64
    %v820 = vpop.permute.xlu0 %819
    %v824 = vsel %vm641, %v724, 0
    %v827 = vsel %vm641, %v725, 0
    %829 = vmatprep.subr.mxu0 0.0
    %830 = vmatpush1.msra.mxu0 %v818
    %831 = vmatprep.subr.mxu0 0.0
    %832 = vmatpush1.msra.mxu0 %v820
    %833 = vmatprep.subr.mxu0 0.0
    %834 = vmatpush1.msra.mxu0 0.0
    %835 = vmatprep.subr.mxu0 0.0
    %836 = vmatpush1.msra.mxu0 0.0
    %837 = vmatprep.subr.mxu0 0.0
    %838 = vmatpush1.msra.mxu0 0.0
    %839 = vmatprep.subr.mxu0 0.0
    %840 = vmatpush1.msra.mxu0 0.0
    %841 = vmatprep.subr.mxu0 0.0
    %842 = vmatpush1.msra.mxu0 0.0
    %843 = vmatprep.subr.mxu0 0.0
    %844 = vmatpush1.msra.mxu0 0.0
    %845 = vmatprep.subr.mxu0 0.0
    %846 = vmatpush1.msra.mxu0 0.0
    %847 = vmatprep.subr.mxu0 0.0
    %848 = vmatpush1.msra.mxu0 0.0
    %849 = vmatprep.subr.mxu0 0.0
    %850 = vmatpush1.msra.mxu0 0.0
    %851 = vmatprep.subr.mxu0 0.0
    %852 = vmatpush1.msra.mxu0 0.0
    %853 = vmatprep.subr.mxu0 0.0
    %854 = vmatpush1.msra.mxu0 0.0
    %855 = vmatprep.subr.mxu0 0.0
    %856 = vmatpush1.msra.mxu0 0.0
    %857 = vmatprep.subr.mxu0 0.0
    %858 = vmatpush1.msra.mxu0 0.0
    %859 = vmatprep.subr.mxu0 0.0
    %860 = vmatpush1.msra.mxu0 0.0
    %861 = vmatprep.subr.mxu0 0.0
    %862 = vmatpush1.msra.mxu0 0.0
    %863 = vmatprep.subr.mxu0 0.0
    %864 = vmatpush1.msra.mxu0 0.0
    %865 = vmatprep.subr.mxu0 0.0
    %866 = vmatpush1.msra.mxu0 0.0
    %867 = vmatprep.subr.mxu0 0.0
    %868 = vmatpush1.msra.mxu0 0.0
    %869 = vmatprep.subr.mxu0 0.0
    %870 = vmatpush1.msra.mxu0 0.0
    %871 = vmatprep.subr.mxu0 0.0
    %872 = vmatpush1.msra.mxu0 0.0
    %873 = vmatprep.subr.mxu0 0.0
    %874 = vmatpush1.msra.mxu0 0.0
    %875 = vmatprep.subr.mxu0 0.0
    %876 = vmatpush1.msra.mxu0 0.0
    %877 = vmatprep.subr.mxu0 0.0
    %878 = vmatpush1.msra.mxu0 0.0
    %879 = vmatprep.subr.mxu0 0.0
    %880 = vmatpush1.msra.mxu0 0.0
    %881 = vmatprep.subr.mxu0 0.0
    %882 = vmatpush1.msra.mxu0 0.0
    %883 = vmatprep.subr.mxu0 0.0
    %884 = vmatpush1.msra.mxu0 0.0
    %885 = vmatprep.subr.mxu0 0.0
    %886 = vmatpush1.msra.mxu0 0.0
    %887 = vmatprep.subr.mxu0 0.0
    %888 = vmatpush1.msra.mxu0 0.0
    %889 = vmatprep.subr.mxu0 0.0
    %890 = vmatpush1.msra.mxu0 0.0
    %891 = vmatprep.subr.mxu0 0.0
    %892 = vmatpush1.msra.mxu0 0.0
    %893 = vmatprep.mubr.f32.mxu0 0.0
    %894 = vmatmul.mubr.f32.gmra.mrb[0].mxu0 %v824
    %v895 = vpop.f32.mrb[0].mxu0
    %v896 = vadd.f32 0.0, %v895
    %v897 = vpop.f32.mrb[0].mxu0
    %898 = vmatprep.mubr.f32.mxu0 0.0
    %899 = vmatmul.mubr.f32.gmra.mrb[0].mxu0 %v827
    %v900 = vpop.f32.mrb[0].mxu0
    %v901 = vadd.f32 0.0, %v900
    %v902 = vpop.f32.mrb[0].mxu0
    %903 = vdwg.mxu0
    %904 = vrot.lane.b32.xlu0 %v269, 64
    %v905 = vpop.permute.xlu0 %904
    %906 = vrot.lane.b32.xlu0 %v271, 64
    %v907 = vpop.permute.xlu0 %906
    %v911 = vsel %vm641, %v726, 0
    %v914 = vsel %vm641, %v727, 0
    %916 = vmatprep.subr.mxu0 0.0
    %917 = vmatpush1.msra.mxu0 %v905
    %918 = vmatprep.subr.mxu0 0.0
    %919 = vmatpush1.msra.mxu0 %v907
    %920 = vmatprep.subr.mxu0 0.0
    %921 = vmatpush1.msra.mxu0 0.0
    %922 = vmatprep.subr.mxu0 0.0
    %923 = vmatpush1.msra.mxu0 0.0
    %924 = vmatprep.subr.mxu0 0.0
    %925 = vmatpush1.msra.mxu0 0.0
    %926 = vmatprep.subr.mxu0 0.0
    %927 = vmatpush1.msra.mxu0 0.0
    %928 = vmatprep.subr.mxu0 0.0
    %929 = vmatpush1.msra.mxu0 0.0
    %930 = vmatprep.subr.mxu0 0.0
    %931 = vmatpush1.msra.mxu0 0.0
    %932 = vmatprep.subr.mxu0 0.0
    %933 = vmatpush1.msra.mxu0 0.0
    %934 = vmatprep.subr.mxu0 0.0
    %935 = vmatpush1.msra.mxu0 0.0
    %936 = vmatprep.subr.mxu0 0.0
    %937 = vmatpush1.msra.mxu0 0.0
    %938 = vmatprep.subr.mxu0 0.0
    %939 = vmatpush1.msra.mxu0 0.0
    %940 = vmatprep.subr.mxu0 0.0
    %941 = vmatpush1.msra.mxu0 0.0
    %942 = vmatprep.subr.mxu0 0.0
    %943 = vmatpush1.msra.mxu0 0.0
    %944 = vmatprep.subr.mxu0 0.0
    %945 = vmatpush1.msra.mxu0 0.0
    %946 = vmatprep.subr.mxu0 0.0
    %947 = vmatpush1.msra.mxu0 0.0
    %948 = vmatprep.subr.mxu0 0.0
    %949 = vmatpush1.msra.mxu0 0.0
    %950 = vmatprep.subr.mxu0 0.0
    %951 = vmatpush1.msra.mxu0 0.0
    %952 = vmatprep.subr.mxu0 0.0
    %953 = vmatpush1.msra.mxu0 0.0
    %954 = vmatprep.subr.mxu0 0.0
    %955 = vmatpush1.msra.mxu0 0.0
    %956 = vmatprep.subr.mxu0 0.0
    %957 = vmatpush1.msra.mxu0 0.0
    %958 = vmatprep.subr.mxu0 0.0
    %959 = vmatpush1.msra.mxu0 0.0
    %960 = vmatprep.subr.mxu0 0.0
    %961 = vmatpush1.msra.mxu0 0.0
    %962 = vmatprep.subr.mxu0 0.0
    %963 = vmatpush1.msra.mxu0 0.0
    %964 = vmatprep.subr.mxu0 0.0
    %965 = vmatpush1.msra.mxu0 0.0
    %966 = vmatprep.subr.mxu0 0.0
    %967 = vmatpush1.msra.mxu0 0.0
    %968 = vmatprep.subr.mxu0 0.0
    %969 = vmatpush1.msra.mxu0 0.0
    %970 = vmatprep.subr.mxu0 0.0
    %971 = vmatpush1.msra.mxu0 0.0
    %972 = vmatprep.subr.mxu0 0.0
    %973 = vmatpush1.msra.mxu0 0.0
    %974 = vmatprep.subr.mxu0 0.0
    %975 = vmatpush1.msra.mxu0 0.0
    %976 = vmatprep.subr.mxu0 0.0
    %977 = vmatpush1.msra.mxu0 0.0
    %978 = vmatprep.subr.mxu0 0.0
    %979 = vmatpush1.msra.mxu0 0.0
    %980 = vmatprep.mubr.f32.mxu0 0.0
    %981 = vmatmul.mubr.f32.gmra.mrb[0].mxu0 %v911
    %v982 = vpop.f32.mrb[0].mxu0
    %v983 = vadd.f32 0.0, %v982
    %v984 = vpop.f32.mrb[0].mxu0
    %985 = vmatprep.mubr.f32.mxu0 0.0
    %986 = vmatmul.mubr.f32.gmra.mrb[0].mxu0 %v914
    %v987 = vpop.f32.mrb[0].mxu0
    %v988 = vadd.f32 0.0, %v987
    %v989 = vpop.f32.mrb[0].mxu0
    %990 = vdwg.mxu0
    %991 = vrot.lane.b32.xlu0 %v273, 64
    %v992 = vpop.permute.xlu0 %991
    %993 = vrot.lane.b32.xlu0 %v275, 64
    %v994 = vpop.permute.xlu0 %993
    %v998 = vsel %vm641, %v728, 0
    %v1001 = vsel %vm641, %v729, 0
    %1003 = vmatprep.subr.mxu0 0.0
    %1004 = vmatpush1.msra.mxu0 %v992
    %1005 = vmatprep.subr.mxu0 0.0
    %1006 = vmatpush1.msra.mxu0 %v994
    %1007 = vmatprep.subr.mxu0 0.0
    %1008 = vmatpush1.msra.mxu0 0.0
    %1009 = vmatprep.subr.mxu0 0.0
    %1010 = vmatpush1.msra.mxu0 0.0
    %1011 = vmatprep.subr.mxu0 0.0
    %1012 = vmatpush1.msra.mxu0 0.0
    %1013 = vmatprep.subr.mxu0 0.0
    %1014 = vmatpush1.msra.mxu0 0.0
    %1015 = vmatprep.subr.mxu0 0.0
    %1016 = vmatpush1.msra.mxu0 0.0
    %1017 = vmatprep.subr.mxu0 0.0
    %1018 = vmatpush1.msra.mxu0 0.0
    %1019 = vmatprep.subr.mxu0 0.0
    %1020 = vmatpush1.msra.mxu0 0.0
    %1021 = vmatprep.subr.mxu0 0.0
    %1022 = vmatpush1.msra.mxu0 0.0
    %1023 = vmatprep.subr.mxu0 0.0
    %1024 = vmatpush1.msra.mxu0 0.0
    %1025 = vmatprep.subr.mxu0 0.0
    %1026 = vmatpush1.msra.mxu0 0.0
    %1027 = vmatprep.subr.mxu0 0.0
    %1028 = vmatpush1.msra.mxu0 0.0
    %1029 = vmatprep.subr.mxu0 0.0
    %1030 = vmatpush1.msra.mxu0 0.0
    %1031 = vmatprep.subr.mxu0 0.0
    %1032 = vmatpush1.msra.mxu0 0.0
    %1033 = vmatprep.subr.mxu0 0.0
    %1034 = vmatpush1.msra.mxu0 0.0
    %1035 = vmatprep.subr.mxu0 0.0
    %1036 = vmatpush1.msra.mxu0 0.0
    %1037 = vmatprep.subr.mxu0 0.0
    %1038 = vmatpush1.msra.mxu0 0.0
    %1039 = vmatprep.subr.mxu0 0.0
    %1040 = vmatpush1.msra.mxu0 0.0
    %1041 = vmatprep.subr.mxu0 0.0
    %1042 = vmatpush1.msra.mxu0 0.0
    %1043 = vmatprep.subr.mxu0 0.0
    %1044 = vmatpush1.msra.mxu0 0.0
    %1045 = vmatprep.subr.mxu0 0.0
    %1046 = vmatpush1.msra.mxu0 0.0
    %1047 = vmatprep.subr.mxu0 0.0
    %1048 = vmatpush1.msra.mxu0 0.0
    %1049 = vmatprep.subr.mxu0 0.0
    %1050 = vmatpush1.msra.mxu0 0.0
    %1051 = vmatprep.subr.mxu0 0.0
    %1052 = vmatpush1.msra.mxu0 0.0
    %1053 = vmatprep.subr.mxu0 0.0
    %1054 = vmatpush1.msra.mxu0 0.0
    %1055 = vmatprep.subr.mxu0 0.0
    %1056 = vmatpush1.msra.mxu0 0.0
    %1057 = vmatprep.subr.mxu0 0.0
    %1058 = vmatpush1.msra.mxu0 0.0
    %1059 = vmatprep.subr.mxu0 0.0
    %1060 = vmatpush1.msra.mxu0 0.0
    %1061 = vmatprep.subr.mxu0 0.0
    %1062 = vmatpush1.msra.mxu0 0.0
    %1063 = vmatprep.subr.mxu0 0.0
    %1064 = vmatpush1.msra.mxu0 0.0
    %1065 = vmatprep.subr.mxu0 0.0
    %1066 = vmatpush1.msra.mxu0 0.0
    %1067 = vmatprep.mubr.f32.mxu0 0.0
    %1068 = vmatmul.mubr.f32.gmra.mrb[0].mxu0 %v998
    %v1069 = vpop.f32.mrb[0].mxu0
    %v1070 = vadd.f32 0.0, %v1069
    %v1071 = vpop.f32.mrb[0].mxu0
    %1072 = vmatprep.mubr.f32.mxu0 0.0
    %1073 = vmatmul.mubr.f32.gmra.mrb[0].mxu0 %v1001
    %v1074 = vpop.f32.mrb[0].mxu0
    %v1075 = vadd.f32 0.0, %v1074
    %v1076 = vpop.f32.mrb[0].mxu0
    %1077 = vdwg.mxu0
    %1080 = vrot.lane.b32.xlu0 %v896, 8
    %v1081 = vpop.permute.xlu0 %1080
    %1082 = vrot.lane.b32.xlu0 %v901, 8
    %v1083 = vpop.permute.xlu0 %1082
    %1088 = vrot.lane.b32.xlu0 %v983, 16
    %v1089 = vpop.permute.xlu0 %1088
    %1090 = vrot.lane.b32.xlu0 %v988, 16
    %v1091 = vpop.permute.xlu0 %1090
    %1096 = vrot.lane.b32.xlu0 %v1070, 24
    %v1097 = vpop.permute.xlu0 %1096
    %1098 = vrot.lane.b32.xlu0 %v1075, 24
    %v1099 = vpop.permute.xlu0 %1098
    %v1102 = vsel %vm280, %v809, %v1081
    %v1103 = vsel %vm280, %v814, %v1083
    %v1104 = vsel %vm641, %v1102, %v1089
    %v1105 = vsel %vm641, %v1103, %v1091
    %vm1106 = vcmask 195584
    %v1107 = vsel %vm1106, %v1104, %v1097
    %v1108 = vsel %vm1106, %v1105, %v1099
    %1113 = vrot.lane.b32.xlu0 %v116, 32
    %v1114 = vpop.permute.xlu0 %1113
    %1115 = vrot.lane.b32.xlu0 %v117, 32
    %v1116 = vpop.permute.xlu0 %1115
    %1117 = vrot.lane.b32.xlu0 %v118, 32
    %v1118 = vpop.permute.xlu0 %1117
    %1119 = vrot.lane.b32.xlu0 %v119, 32
    %v1120 = vpop.permute.xlu0 %1119
    %1125 = vrot.lane.b32.xlu0 %v179, 32
    %v1126 = vpop.permute.xlu0 %1125
    %v1129 = vsel %vm121, %v1107, 0
    %v1132 = vsel %vm121, %v1108, 0
    %1134 = vmatprep.subr.mxu0 0.0
    %1135 = vmatpush1.msra.mxu0 %v1114
    %1136 = vmatprep.subr.mxu0 0.0
    %1137 = vmatpush1.msra.mxu0 %v1116
    %1138 = vmatprep.subr.mxu0 0.0
    %1139 = vmatpush1.msra.mxu0 %v1118
    %1140 = vmatprep.subr.mxu0 0.0
    %1141 = vmatpush1.msra.mxu0 %v1120
    %1142 = vmatprep.subr.mxu0 0.0
    %1143 = vmatpush1.msra.mxu0 0.0
    %1144 = vmatprep.subr.mxu0 0.0
    %1145 = vmatpush1.msra.mxu0 0.0
    %1146 = vmatprep.subr.mxu0 0.0
    %1147 = vmatpush1.msra.mxu0 0.0
    %1148 = vmatprep.subr.mxu0 0.0
    %1149 = vmatpush1.msra.mxu0 0.0
    %1150 = vmatprep.subr.mxu0 0.0
    %1151 = vmatpush1.msra.mxu0 0.0
    %1152 = vmatprep.subr.mxu0 0.0
    %1153 = vmatpush1.msra.mxu0 0.0
    %1154 = vmatprep.subr.mxu0 0.0
    %1155 = vmatpush1.msra.mxu0 0.0
    %1156 = vmatprep.subr.mxu0 0.0
    %1157 = vmatpush1.msra.mxu0 0.0
    %1158 = vmatprep.subr.mxu0 0.0
    %1159 = vmatpush1.msra.mxu0 0.0
    %1160 = vmatprep.subr.mxu0 0.0
    %1161 = vmatpush1.msra.mxu0 0.0
    %1162 = vmatprep.subr.mxu0 0.0
    %1163 = vmatpush1.msra.mxu0 0.0
    %1164 = vmatprep.subr.mxu0 0.0
    %1165 = vmatpush1.msra.mxu0 0.0
    %1166 = vmatprep.subr.mxu0 0.0
    %1167 = vmatpush1.msra.mxu0 0.0
    %1168 = vmatprep.subr.mxu0 0.0
    %1169 = vmatpush1.msra.mxu0 0.0
    %1170 = vmatprep.subr.mxu0 0.0
    %1171 = vmatpush1.msra.mxu0 0.0
    %1172 = vmatprep.subr.mxu0 0.0
    %1173 = vmatpush1.msra.mxu0 0.0
    %1174 = vmatprep.subr.mxu0 0.0
    %1175 = vmatpush1.msra.mxu0 0.0
    %1176 = vmatprep.subr.mxu0 0.0
    %1177 = vmatpush1.msra.mxu0 0.0
    %1178 = vmatprep.subr.mxu0 0.0
    %1179 = vmatpush1.msra.mxu0 0.0
    %1180 = vmatprep.subr.mxu0 0.0
    %1181 = vmatpush1.msra.mxu0 0.0
    %1182 = vmatprep.subr.mxu0 0.0
    %1183 = vmatpush1.msra.mxu0 0.0
    %1184 = vmatprep.subr.mxu0 0.0
    %1185 = vmatpush1.msra.mxu0 0.0
    %1186 = vmatprep.subr.mxu0 0.0
    %1187 = vmatpush1.msra.mxu0 0.0
    %1188 = vmatprep.subr.mxu0 0.0
    %1189 = vmatpush1.msra.mxu0 0.0
    %1190 = vmatprep.subr.mxu0 0.0
    %1191 = vmatpush1.msra.mxu0 0.0
    %1192 = vmatprep.subr.mxu0 0.0
    %1193 = vmatpush1.msra.mxu0 0.0
    %1194 = vmatprep.subr.mxu0 0.0
    %1195 = vmatpush1.msra.mxu0 0.0
    %1196 = vmatprep.subr.mxu0 0.0
    %1197 = vmatpush1.msra.mxu0 0.0
    %1198 = vmatprep.mubr.f32.mxu0 0.0
    %1199 = vmatmul.mubr.f32.gmra.mrb[0].mxu0 %v1129
    %v1200 = vpop.f32.mrb[0].mxu0
    %v1201 = vadd.f32 %v1126, %v1200
    %v1202 = vpop.f32.mrb[0].mxu0
    %1203 = vmatprep.mubr.f32.mxu0 0.0
    %1204 = vmatmul.mubr.f32.gmra.mrb[0].mxu0 %v1132
    %v1205 = vpop.f32.mrb[0].mxu0
    %v1206 = vadd.f32 %v1126, %v1205
    %v1207 = vpop.f32.mrb[0].mxu0
    %1208 = vdwg.mxu0
    %v1209 = vadd.f32 %v173, %v1201
    %v1210 = vadd.f32 %v174, %v1206
    %v1211 = vsel %vm121, %v1209, 0.0
    %1212 = vadd.xlane.f32.xlu0 %v1211
    %v1213 = vpop.xlane.xlu0 %1212
    %v1214 = vsel %vm121, %v1210, 0.0
    %1215 = vadd.xlane.f32.xlu0 %v1214
    %v1216 = vpop.xlane.xlu0 %1215
    %v1217 = vmul.f32 %v1213, %v128
    %v1218 = vmul.f32 %v1216, %v128
    %v1219 = vsub.f32 %v1209, %v1217
    %v1220 = vsub.f32 %v1210, %v1218
    %v1221 = vmul.f32 %v1219, %v1219
    %v1222 = vmul.f32 %v1220, %v1220
    %v1223 = vsel %vm121, %v1221, 0.0
    %1224 = vadd.xlane.f32.xlu0 %v1223
    %v1225 = vpop.xlane.xlu0 %1224
    %v1226 = vsel %vm121, %v1222, 0.0
    %1227 = vadd.xlane.f32.xlu0 %v1226
    %v1228 = vpop.xlane.xlu0 %1227
    %v1229 = vmul.f32 %v1225, 0.032258064
    %v1230 = vmul.f32 %v1228, 0.032258064
    %v1231 = vrsqrt.pop %v1229
    %v1232 = vmul.f32 %v1229, %v1231
    %vm1233 = vcmp.eq.f32.partialorder %v1229, inf
    %v1234 = vsel %vm1233, %v1229, %v1232
    %vm1235 = vcmp.eq.f32.partialorder %v1229, 0.0
    %v1236 = vand.u32 %v1229, 2147483648
    %v1237 = vsel %vm1235, %v1236, %v1234
    %v1238 = vrsqrt.pop %v1230
    %v1239 = vmul.f32 %v1230, %v1238
    %vm1240 = vcmp.eq.f32.partialorder %v1230, inf
    %v1241 = vsel %vm1240, %v1230, %v1239
    %vm1242 = vcmp.eq.f32.partialorder %v1230, 0.0
    %v1243 = vand.u32 %v1230, 2147483648
    %v1244 = vsel %vm1242, %v1243, %v1241
    %v1245 = vadd.f32 %v1237, 1e-06
    %v1246 = vadd.f32 %v1244, 1e-06
    %v1247 = vrcp.pop %v1245
    %v1248 = vrcp.pop %v1246
    %v1249 = vlaneseq
    %v1250 = vshrl.u32 %v1249, 7
    %v1251 = vsub.s32 2, %v1250
    %v1252 = vrot.slane %v115, %v1251
    %v1253 = vmul.f32 %v1252, %v1219
    %v1254 = vmul.f32 %v1252, %v1220
    %v1255 = vmul.f32 %v1253, %v1247
    %v1256 = vmul.f32 %v1254, %v1248
    %v1257 = vlaneseq
    %v1258 = vshrl.u32 %v1257, 7
    %v1259 = vsub.s32 3, %v1258
    %v1260 = vrot.slane %v115, %v1259
    %v1261 = vadd.f32 %v1255, %v1260
    %v1262 = vadd.f32 %v1256, %v1260
    %v1263 = vpack.c.bf16 %v1262, %v1261
    %v1264 = vld [vmem:[#allocation10] sm:$0xff]
    %v1265 = vld [vmem:[#allocation10 + $0x8] sm:$0xff]
    %v1266 = vld [vmem:[#allocation10 + $0x10] sm:$0xff]
    %v1267 = vld [vmem:[#allocation10 + $0x18] sm:$0xff]
    %v1268 = vld [vmem:[#allocation10 + $0x20] sm:$0xff]
    %v1269 = vld [vmem:[#allocation10 + $0x28] sm:$0xff]
    %v1270 = vld [vmem:[#allocation10 + $0x30] sm:$0xff]
    %v1271 = vld [vmem:[#allocation10 + $0x38] sm:$0xff]
    %v1272 = vld [vmem:[#allocation10 + $0x40] sm:$0xff]
    %v1273 = vld [vmem:[#allocation10 + $0x48] sm:$0xff]
    %v1274 = vld [vmem:[#allocation10 + $0x50] sm:$0xff]
    %v1275 = vld [vmem:[#allocation10 + $0x58] sm:$0xff]
    %v1276 = vld [vmem:[#allocation10 + $0x60] sm:$0xff]
    %v1277 = vld [vmem:[#allocation10 + $0x68] sm:$0xff]
    %v1278 = vld [vmem:[#allocation10 + $0x70] sm:$0xff]
    %v1279 = vld [vmem:[#allocation10 + $0x78] sm:$0xff]
    %v1280 = vld [vmem:[#allocation10 + $0x80] sm:$0xff]
    %v1281 = vld [vmem:[#allocation10 + $0x88] sm:$0xff]
    %v1282 = vld [vmem:[#allocation10 + $0x90] sm:$0xff]
    %v1283 = vld [vmem:[#allocation10 + $0x98] sm:$0xff]
    %v1284 = vld [vmem:[#allocation10 + $0xa0] sm:$0xff]
    %v1285 = vld [vmem:[#allocation10 + $0xa8] sm:$0xff]
    %v1286 = vld [vmem:[#allocation10 + $0xb0] sm:$0xff]
    %v1287 = vld [vmem:[#allocation10 + $0xb8] sm:$0xff]
    %v1288 = vld [vmem:[#allocation10 + $0xc0] sm:$0xff]
    %v1289 = vld [vmem:[#allocation10 + $0xc8] sm:$0xff]
    %v1290 = vld [vmem:[#allocation10 + $0xd0] sm:$0xff]
    %v1291 = vld [vmem:[#allocation10 + $0xd8] sm:$0xff]
    %v1292 = vld [vmem:[#allocation10 + $0xe0] sm:$0xff]
    %v1293 = vld [vmem:[#allocation10 + $0xe8] sm:$0xff]
    %v1294 = vld [vmem:[#allocation10 + $0xf0] sm:$0xff]
    %v1295 = vld [vmem:[#allocation10 + $0xf8] sm:$0xff]
    %v1296 = vld [vmem:[%s6] sm:$0xff]
    %v1297 = vld [vmem:[%s6 + $0x8] sm:$0xff]
    %v1300 = vlaneseq
    %v1301 = vshrl.u32 %v1300, 7
    %v1302 = vsub.s32 0, %v1301
    %v1303 = vrot.slane %v1296, %v1302
    %v1304 = vlaneseq
    %v1305 = vshrl.u32 %v1304, 7
    %v1306 = vsub.s32 1, %v1305
    %v1307 = vrot.slane %v1296, %v1306
    %v1308 = vlaneseq
    %v1309 = vshrl.u32 %v1308, 7
    %v1310 = vsub.s32 2, %v1309
    %v1311 = vrot.slane %v1296, %v1310
    %v1312 = vlaneseq
    %v1313 = vshrl.u32 %v1312, 7
    %v1314 = vsub.s32 3, %v1313
    %v1315 = vrot.slane %v1296, %v1314
    %v1316 = vlaneseq
    %v1317 = vshrl.u32 %v1316, 7
    %v1318 = vsub.s32 4, %v1317
    %v1319 = vrot.slane %v1296, %v1318
    %v1320 = vlaneseq
    %v1321 = vshrl.u32 %v1320, 7
    %v1322 = vsub.s32 5, %v1321
    %v1323 = vrot.slane %v1296, %v1322
    %v1324 = vlaneseq
    %v1325 = vshrl.u32 %v1324, 7
    %v1326 = vsub.s32 6, %v1325
    %v1327 = vrot.slane %v1296, %v1326
    %v1328 = vlaneseq
    %v1329 = vshrl.u32 %v1328, 7
    %v1330 = vsub.s32 7, %v1329
    %v1331 = vrot.slane %v1296, %v1330
    %v1332 = vlaneseq
    %v1333 = vshrl.u32 %v1332, 7
    %v1334 = vsub.s32 0, %v1333
    %v1335 = vrot.slane %v1297, %v1334
    %v1336 = vlaneseq
    %v1337 = vshrl.u32 %v1336, 7
    %v1338 = vsub.s32 1, %v1337
    %v1339 = vrot.slane %v1297, %v1338
    %v1340 = vlaneseq
    %v1341 = vshrl.u32 %v1340, 7
    %v1342 = vsub.s32 2, %v1341
    %v1343 = vrot.slane %v1297, %v1342
    %v1344 = vlaneseq
    %v1345 = vshrl.u32 %v1344, 7
    %v1346 = vsub.s32 3, %v1345
    %v1347 = vrot.slane %v1297, %v1346
    %v1348 = vlaneseq
    %v1349 = vshrl.u32 %v1348, 7
    %v1350 = vsub.s32 4, %v1349
    %v1351 = vrot.slane %v1297, %v1350
    %v1352 = vlaneseq
    %v1353 = vshrl.u32 %v1352, 7
    %v1354 = vsub.s32 5, %v1353
    %v1355 = vrot.slane %v1297, %v1354
    %v1356 = vlaneseq
    %v1357 = vshrl.u32 %v1356, 7
    %v1358 = vsub.s32 6, %v1357
    %v1359 = vrot.slane %v1297, %v1358
    %v1360 = vlaneseq
    %v1361 = vshrl.u32 %v1360, 7
    %v1362 = vsub.s32 7, %v1361
    %v1363 = vrot.slane %v1297, %v1362
    %v1412 = vunpack.c.l.b16 %v1264
    %v1413 = vunpack.c.h.b16 %v1264
    %v1414 = vunpack.c.l.b16 %v1265
    %v1415 = vunpack.c.h.b16 %v1265
    %v1416 = vunpack.c.l.b16 %v1266
    %v1417 = vunpack.c.h.b16 %v1266
    %v1418 = vunpack.c.l.b16 %v1267
    %v1419 = vunpack.c.h.b16 %v1267
    %v1420 = vunpack.c.l.b16 %v1268
    %v1421 = vunpack.c.h.b16 %v1268
    %v1422 = vunpack.c.l.b16 %v1269
    %v1423 = vunpack.c.h.b16 %v1269
    %v1424 = vunpack.c.l.b16 %v1270
    %v1425 = vunpack.c.h.b16 %v1270
    %v1426 = vunpack.c.l.b16 %v1271
    %v1427 = vunpack.c.h.b16 %v1271
    %v1428 = vunpack.c.l.b16 %v1272
    %v1429 = vunpack.c.h.b16 %v1272
    %v1430 = vunpack.c.l.b16 %v1273
    %v1431 = vunpack.c.h.b16 %v1273
    %v1432 = vunpack.c.l.b16 %v1274
    %v1433 = vunpack.c.h.b16 %v1274
    %v1434 = vunpack.c.l.b16 %v1275
    %v1435 = vunpack.c.h.b16 %v1275
    %v1436 = vunpack.c.l.b16 %v1276
    %v1437 = vunpack.c.h.b16 %v1276
    %v1438 = vunpack.c.l.b16 %v1277
    %v1439 = vunpack.c.h.b16 %v1277
    %v1440 = vunpack.c.l.b16 %v1278
    %v1441 = vunpack.c.h.b16 %v1278
    %v1442 = vunpack.c.l.b16 %v1279
    %v1443 = vunpack.c.h.b16 %v1279
    %v1444 = vunpack.c.l.b16 %v1280
    %v1445 = vunpack.c.h.b16 %v1280
    %v1446 = vunpack.c.l.b16 %v1281
    %v1447 = vunpack.c.h.b16 %v1281
    %v1448 = vunpack.c.l.b16 %v1282
    %v1449 = vunpack.c.h.b16 %v1282
    %v1450 = vunpack.c.l.b16 %v1283
    %v1451 = vunpack.c.h.b16 %v1283
    %v1452 = vunpack.c.l.b16 %v1284
    %v1453 = vunpack.c.h.b16 %v1284
    %v1454 = vunpack.c.l.b16 %v1285
    %v1455 = vunpack.c.h.b16 %v1285
    %v1456 = vunpack.c.l.b16 %v1286
    %v1457 = vunpack.c.h.b16 %v1286
    %v1458 = vunpack.c.l.b16 %v1287
    %v1459 = vunpack.c.h.b16 %v1287
    %v1460 = vunpack.c.l.b16 %v1288
    %v1461 = vunpack.c.h.b16 %v1288
    %v1462 = vunpack.c.l.b16 %v1289
    %v1463 = vunpack.c.h.b16 %v1289
    %v1464 = vunpack.c.l.b16 %v1290
    %v1465 = vunpack.c.h.b16 %v1290
    %v1466 = vunpack.c.l.b16 %v1291
    %v1467 = vunpack.c.h.b16 %v1291
    %v1468 = vunpack.c.l.b16 %v1292
    %v1469 = vunpack.c.h.b16 %v1292
    %v1470 = vunpack.c.l.b16 %v1293
    %v1471 = vunpack.c.h.b16 %v1293
    %v1472 = vunpack.c.l.b16 %v1294
    %v1473 = vunpack.c.h.b16 %v1294
    %v1474 = vunpack.c.l.b16 %v1295
    %v1475 = vunpack.c.h.b16 %v1295
    %v1476 = vpack.c.b16 %v1428, %v1412
    %v1477 = vpack.c.b16 %v1429, %v1413
    %v1478 = vpack.c.b16 %v1430, %v1414
    %v1479 = vpack.c.b16 %v1431, %v1415
    %v1480 = vpack.c.b16 %v1432, %v1416
    %v1481 = vpack.c.b16 %v1433, %v1417
    %v1482 = vpack.c.b16 %v1434, %v1418
    %v1483 = vpack.c.b16 %v1435, %v1419
    %v1484 = vpack.c.b16 %v1436, %v1420
    %v1485 = vpack.c.b16 %v1437, %v1421
    %v1486 = vpack.c.b16 %v1438, %v1422
    %v1487 = vpack.c.b16 %v1439, %v1423
    %v1488 = vpack.c.b16 %v1440, %v1424
    %v1489 = vpack.c.b16 %v1441, %v1425
    %v1490 = vpack.c.b16 %v1442, %v1426
    %v1491 = vpack.c.b16 %v1443, %v1427
    %v1492 = vpack.c.b16 %v1460, %v1444
    %v1493 = vpack.c.b16 %v1461, %v1445
    %v1494 = vpack.c.b16 %v1462, %v1446
    %v1495 = vpack.c.b16 %v1463, %v1447
    %v1496 = vpack.c.b16 %v1464, %v1448
    %v1497 = vpack.c.b16 %v1465, %v1449
    %v1498 = vpack.c.b16 %v1466, %v1450
    %v1499 = vpack.c.b16 %v1467, %v1451
    %v1500 = vpack.c.b16 %v1468, %v1452
    %v1501 = vpack.c.b16 %v1469, %v1453
    %v1502 = vpack.c.b16 %v1470, %v1454
    %v1503 = vpack.c.b16 %v1471, %v1455
    %v1504 = vpack.c.b16 %v1472, %v1456
    %v1505 = vpack.c.b16 %v1473, %v1457
    %v1506 = vpack.c.b16 %v1474, %v1458
    %v1507 = vpack.c.b16 %v1475, %v1459
    %v1541 = vsel %vm121, %v1263, 0
    %1543 = vmatprep.subr.bf16.mxu0 %v1477
    %1544 = vmatpush1.bf16.msra.mxu0 %v1476
    %1545 = vmatprep.subr.bf16.mxu0 %v1493
    %1546 = vmatpush1.bf16.msra.mxu0 %v1492
    %1547 = vmatprep.subr.bf16.mxu0 0
    %1548 = vmatpush1.bf16.msra.mxu0 0
    %1549 = vmatprep.subr.bf16.mxu0 0
    %1550 = vmatpush1.bf16.msra.mxu0 0
    %1551 = vmatprep.subr.bf16.mxu0 0
    %1552 = vmatpush1.bf16.msra.mxu0 0
    %1553 = vmatprep.subr.bf16.mxu0 0
    %1554 = vmatpush1.bf16.msra.mxu0 0
    %1555 = vmatprep.subr.bf16.mxu0 0
    %1556 = vmatpush1.bf16.msra.mxu0 0
    %1557 = vmatprep.subr.bf16.mxu0 0
    %1558 = vmatpush1.bf16.msra.mxu0 0
    %1559 = vmatprep.subr.bf16.mxu0 0
    %1560 = vmatpush1.bf16.msra.mxu0 0
    %1561 = vmatprep.subr.bf16.mxu0 0
    %1562 = vmatpush1.bf16.msra.mxu0 0
    %1563 = vmatprep.subr.bf16.mxu0 0
    %1564 = vmatpush1.bf16.msra.mxu0 0
    %1565 = vmatprep.subr.bf16.mxu0 0
    %1566 = vmatpush1.bf16.msra.mxu0 0
    %1567 = vmatprep.subr.bf16.mxu0 0
    %1568 = vmatpush1.bf16.msra.mxu0 0
    %1569 = vmatprep.subr.bf16.mxu0 0
    %1570 = vmatpush1.bf16.msra.mxu0 0
    %1571 = vmatprep.subr.bf16.mxu0 0
    %1572 = vmatpush1.bf16.msra.mxu0 0
    %1573 = vmatprep.subr.bf16.mxu0 0
    %1574 = vmatpush1.bf16.msra.mxu0 0
    %1575 = vmatprep.mubr.bf16.mxu0 0
    %1576 = vmatmul.mubr.bf16.gmra.mrb[0].mxu0 %v1541
    %v1577 = vpop.f32.mrb[0].mxu0
    %v1578 = vadd.f32 %v1303, %v1577
    %v1579 = vpop.f32.mrb[0].mxu0
    %v1580 = vadd.f32 %v1307, %v1579
    %v1581 = vpop.f32.mrb[0].mxu0
    %v1582 = vadd.f32 %v1303, %v1581
    %v1583 = vpop.f32.mrb[0].mxu0
    %v1584 = vadd.f32 %v1307, %v1583
    %1585 = vdwg.mxu0
    %1586 = vmatprep.subr.bf16.mxu0 %v1479
    %1587 = vmatpush1.bf16.msra.mxu0 %v1478
    %1588 = vmatprep.subr.bf16.mxu0 %v1495
    %1589 = vmatpush1.bf16.msra.mxu0 %v1494
    %1590 = vmatprep.subr.bf16.mxu0 0
    %1591 = vmatpush1.bf16.msra.mxu0 0
    %1592 = vmatprep.subr.bf16.mxu0 0
    %1593 = vmatpush1.bf16.msra.mxu0 0
    %1594 = vmatprep.subr.bf16.mxu0 0
    %1595 = vmatpush1.bf16.msra.mxu0 0
    %1596 = vmatprep.subr.bf16.mxu0 0
    %1597 = vmatpush1.bf16.msra.mxu0 0
    %1598 = vmatprep.subr.bf16.mxu0 0
    %1599 = vmatpush1.bf16.msra.mxu0 0
    %1600 = vmatprep.subr.bf16.mxu0 0
    %1601 = vmatpush1.bf16.msra.mxu0 0
    %1602 = vmatprep.subr.bf16.mxu0 0
    %1603 = vmatpush1.bf16.msra.mxu0 0
    %1604 = vmatprep.subr.bf16.mxu0 0
    %1605 = vmatpush1.bf16.msra.mxu0 0
    %1606 = vmatprep.subr.bf16.mxu0 0
    %1607 = vmatpush1.bf16.msra.mxu0 0
    %1608 = vmatprep.subr.bf16.mxu0 0
    %1609 = vmatpush1.bf16.msra.mxu0 0
    %1610 = vmatprep.subr.bf16.mxu0 0
    %1611 = vmatpush1.bf16.msra.mxu0 0
    %1612 = vmatprep.subr.bf16.mxu0 0
    %1613 = vmatpush1.bf16.msra.mxu0 0
    %1614 = vmatprep.subr.bf16.mxu0 0
    %1615 = vmatpush1.bf16.msra.mxu0 0
    %1616 = vmatprep.subr.bf16.mxu0 0
    %1617 = vmatpush1.bf16.msra.mxu0 0
    %1618 = vmatprep.mubr.bf16.mxu0 0
    %1619 = vmatmul.mubr.bf16.gmra.mrb[0].mxu0 %v1541
    %v1620 = vpop.f32.mrb[0].mxu0
    %v1621 = vadd.f32 %v1311, %v1620
    %v1622 = vpop.f32.mrb[0].mxu0
    %v1623 = vadd.f32 %v1315, %v1622
    %v1624 = vpop.f32.mrb[0].mxu0
    %v1625 = vadd.f32 %v1311, %v1624
    %v1626 = vpop.f32.mrb[0].mxu0
    %v1627 = vadd.f32 %v1315, %v1626
    %1628 = vdwg.mxu0
    %1629 = vmatprep.subr.bf16.mxu0 %v1481
    %1630 = vmatpush1.bf16.msra.mxu0 %v1480
    %1631 = vmatprep.subr.bf16.mxu0 %v1497
    %1632 = vmatpush1.bf16.msra.mxu0 %v1496
    %1633 = vmatprep.subr.bf16.mxu0 0
    %1634 = vmatpush1.bf16.msra.mxu0 0
    %1635 = vmatprep.subr.bf16.mxu0 0
    %1636 = vmatpush1.bf16.msra.mxu0 0
    %1637 = vmatprep.subr.bf16.mxu0 0
    %1638 = vmatpush1.bf16.msra.mxu0 0
    %1639 = vmatprep.subr.bf16.mxu0 0
    %1640 = vmatpush1.bf16.msra.mxu0 0
    %1641 = vmatprep.subr.bf16.mxu0 0
    %1642 = vmatpush1.bf16.msra.mxu0 0
    %1643 = vmatprep.subr.bf16.mxu0 0
    %1644 = vmatpush1.bf16.msra.mxu0 0
    %1645 = vmatprep.subr.bf16.mxu0 0
    %1646 = vmatpush1.bf16.msra.mxu0 0
    %1647 = vmatprep.subr.bf16.mxu0 0
    %1648 = vmatpush1.bf16.msra.mxu0 0
    %1649 = vmatprep.subr.bf16.mxu0 0
    %1650 = vmatpush1.bf16.msra.mxu0 0
    %1651 = vmatprep.subr.bf16.mxu0 0
    %1652 = vmatpush1.bf16.msra.mxu0 0
    %1653 = vmatprep.subr.bf16.mxu0 0
    %1654 = vmatpush1.bf16.msra.mxu0 0
    %1655 = vmatprep.subr.bf16.mxu0 0
    %1656 = vmatpush1.bf16.msra.mxu0 0
    %1657 = vmatprep.subr.bf16.mxu0 0
    %1658 = vmatpush1.bf16.msra.mxu0 0
    %1659 = vmatprep.subr.bf16.mxu0 0
    %1660 = vmatpush1.bf16.msra.mxu0 0
    %1661 = vmatprep.mubr.bf16.mxu0 0
    %1662 = vmatmul.mubr.bf16.gmra.mrb[0].mxu0 %v1541
    %v1663 = vpop.f32.mrb[0].mxu0
    %v1664 = vadd.f32 %v1319, %v1663
    %v1665 = vpop.f32.mrb[0].mxu0
    %v1666 = vadd.f32 %v1323, %v1665
    %v1667 = vpop.f32.mrb[0].mxu0
    %v1668 = vadd.f32 %v1319, %v1667
    %v1669 = vpop.f32.mrb[0].mxu0
    %v1670 = vadd.f32 %v1323, %v1669
    %1671 = vdwg.mxu0
    %1672 = vmatprep.subr.bf16.mxu0 %v1483
    %1673 = vmatpush1.bf16.msra.mxu0 %v1482
    %1674 = vmatprep.subr.bf16.mxu0 %v1499
    %1675 = vmatpush1.bf16.msra.mxu0 %v1498
    %1676 = vmatprep.subr.bf16.mxu0 0
    %1677 = vmatpush1.bf16.msra.mxu0 0
    %1678 = vmatprep.subr.bf16.mxu0 0
    %1679 = vmatpush1.bf16.msra.mxu0 0
    %1680 = vmatprep.subr.bf16.mxu0 0
    %1681 = vmatpush1.bf16.msra.mxu0 0
    %1682 = vmatprep.subr.bf16.mxu0 0
    %1683 = vmatpush1.bf16.msra.mxu0 0
    %1684 = vmatprep.subr.bf16.mxu0 0
    %1685 = vmatpush1.bf16.msra.mxu0 0
    %1686 = vmatprep.subr.bf16.mxu0 0
    %1687 = vmatpush1.bf16.msra.mxu0 0
    %1688 = vmatprep.subr.bf16.mxu0 0
    %1689 = vmatpush1.bf16.msra.mxu0 0
    %1690 = vmatprep.subr.bf16.mxu0 0
    %1691 = vmatpush1.bf16.msra.mxu0 0
    %1692 = vmatprep.subr.bf16.mxu0 0
    %1693 = vmatpush1.bf16.msra.mxu0 0
    %1694 = vmatprep.subr.bf16.mxu0 0
    %1695 = vmatpush1.bf16.msra.mxu0 0
    %1696 = vmatprep.subr.bf16.mxu0 0
    %1697 = vmatpush1.bf16.msra.mxu0 0
    %1698 = vmatprep.subr.bf16.mxu0 0
    %1699 = vmatpush1.bf16.msra.mxu0 0
    %1700 = vmatprep.subr.bf16.mxu0 0
    %1701 = vmatpush1.bf16.msra.mxu0 0
    %1702 = vmatprep.subr.bf16.mxu0 0
    %1703 = vmatpush1.bf16.msra.mxu0 0
    %1704 = vmatprep.mubr.bf16.mxu0 0
    %1705 = vmatmul.mubr.bf16.gmra.mrb[0].mxu0 %v1541
    %v1706 = vpop.f32.mrb[0].mxu0
    %v1707 = vadd.f32 %v1327, %v1706
    %v1708 = vpop.f32.mrb[0].mxu0
    %v1709 = vadd.f32 %v1331, %v1708
    %v1710 = vpop.f32.mrb[0].mxu0
    %v1711 = vadd.f32 %v1327, %v1710
    %v1712 = vpop.f32.mrb[0].mxu0
    %v1713 = vadd.f32 %v1331, %v1712
    %1714 = vdwg.mxu0
    %1715 = vmatprep.subr.bf16.mxu0 %v1485
    %1716 = vmatpush1.bf16.msra.mxu0 %v1484
    %1717 = vmatprep.subr.bf16.mxu0 %v1501
    %1718 = vmatpush1.bf16.msra.mxu0 %v1500
    %1719 = vmatprep.subr.bf16.mxu0 0
    %1720 = vmatpush1.bf16.msra.mxu0 0
    %1721 = vmatprep.subr.bf16.mxu0 0
    %1722 = vmatpush1.bf16.msra.mxu0 0
    %1723 = vmatprep.subr.bf16.mxu0 0
    %1724 = vmatpush1.bf16.msra.mxu0 0
    %1725 = vmatprep.subr.bf16.mxu0 0
    %1726 = vmatpush1.bf16.msra.mxu0 0
    %1727 = vmatprep.subr.bf16.mxu0 0
    %1728 = vmatpush1.bf16.msra.mxu0 0
    %1729 = vmatprep.subr.bf16.mxu0 0
    %1730 = vmatpush1.bf16.msra.mxu0 0
    %1731 = vmatprep.subr.bf16.mxu0 0
    %1732 = vmatpush1.bf16.msra.mxu0 0
    %1733 = vmatprep.subr.bf16.mxu0 0
    %1734 = vmatpush1.bf16.msra.mxu0 0
    %1735 = vmatprep.subr.bf16.mxu0 0
    %1736 = vmatpush1.bf16.msra.mxu0 0
    %1737 = vmatprep.subr.bf16.mxu0 0
    %1738 = vmatpush1.bf16.msra.mxu0 0
    %1739 = vmatprep.subr.bf16.mxu0 0
    %1740 = vmatpush1.bf16.msra.mxu0 0
    %1741 = vmatprep.subr.bf16.mxu0 0
    %1742 = vmatpush1.bf16.msra.mxu0 0
    %1743 = vmatprep.subr.bf16.mxu0 0
    %1744 = vmatpush1.bf16.msra.mxu0 0
    %1745 = vmatprep.subr.bf16.mxu0 0
    %1746 = vmatpush1.bf16.msra.mxu0 0
    %1747 = vmatprep.mubr.bf16.mxu0 0
    %1748 = vmatmul.mubr.bf16.gmra.mrb[0].mxu0 %v1541
    %v1749 = vpop.f32.mrb[0].mxu0
    %v1750 = vadd.f32 %v1335, %v1749
    %v1751 = vpop.f32.mrb[0].mxu0
    %v1752 = vadd.f32 %v1339, %v1751
    %v1753 = vpop.f32.mrb[0].mxu0
    %v1754 = vadd.f32 %v1335, %v1753
    %v1755 = vpop.f32.mrb[0].mxu0
    %v1756 = vadd.f32 %v1339, %v1755
    %1757 = vdwg.mxu0
    %1758 = vmatprep.subr.bf16.mxu0 %v1487
    %1759 = vmatpush1.bf16.msra.mxu0 %v1486
    %1760 = vmatprep.subr.bf16.mxu0 %v1503
    %1761 = vmatpush1.bf16.msra.mxu0 %v1502
    %1762 = vmatprep.subr.bf16.mxu0 0
    %1763 = vmatpush1.bf16.msra.mxu0 0
    %1764 = vmatprep.subr.bf16.mxu0 0
    %1765 = vmatpush1.bf16.msra.mxu0 0
    %1766 = vmatprep.subr.bf16.mxu0 0
    %1767 = vmatpush1.bf16.msra.mxu0 0
    %1768 = vmatprep.subr.bf16.mxu0 0
    %1769 = vmatpush1.bf16.msra.mxu0 0
    %1770 = vmatprep.subr.bf16.mxu0 0
    %1771 = vmatpush1.bf16.msra.mxu0 0
    %1772 = vmatprep.subr.bf16.mxu0 0
    %1773 = vmatpush1.bf16.msra.mxu0 0
    %1774 = vmatprep.subr.bf16.mxu0 0
    %1775 = vmatpush1.bf16.msra.mxu0 0
    %1776 = vmatprep.subr.bf16.mxu0 0
    %1777 = vmatpush1.bf16.msra.mxu0 0
    %1778 = vmatprep.subr.bf16.mxu0 0
    %1779 = vmatpush1.bf16.msra.mxu0 0
    %1780 = vmatprep.subr.bf16.mxu0 0
    %1781 = vmatpush1.bf16.msra.mxu0 0
    %1782 = vmatprep.subr.bf16.mxu0 0
    %1783 = vmatpush1.bf16.msra.mxu0 0
    %1784 = vmatprep.subr.bf16.mxu0 0
    %1785 = vmatpush1.bf16.msra.mxu0 0
    %1786 = vmatprep.subr.bf16.mxu0 0
    %1787 = vmatpush1.bf16.msra.mxu0 0
    %1788 = vmatprep.subr.bf16.mxu0 0
    %1789 = vmatpush1.bf16.msra.mxu0 0
    %1790 = vmatprep.mubr.bf16.mxu0 0
    %1791 = vmatmul.mubr.bf16.gmra.mrb[0].mxu0 %v1541
    %v1792 = vpop.f32.mrb[0].mxu0
    %v1793 = vadd.f32 %v1343, %v1792
    %v1794 = vpop.f32.mrb[0].mxu0
    %v1795 = vadd.f32 %v1347, %v1794
    %v1796 = vpop.f32.mrb[0].mxu0
    %v1797 = vadd.f32 %v1343, %v1796
    %v1798 = vpop.f32.mrb[0].mxu0
    %v1799 = vadd.f32 %v1347, %v1798
    %1800 = vdwg.mxu0
    %1801 = vmatprep.subr.bf16.mxu0 %v1489
    %1802 = vmatpush1.bf16.msra.mxu0 %v1488
    %1803 = vmatprep.subr.bf16.mxu0 %v1505
    %1804 = vmatpush1.bf16.msra.mxu0 %v1504
    %1805 = vmatprep.subr.bf16.mxu0 0
    %1806 = vmatpush1.bf16.msra.mxu0 0
    %1807 = vmatprep.subr.bf16.mxu0 0
    %1808 = vmatpush1.bf16.msra.mxu0 0
    %1809 = vmatprep.subr.bf16.mxu0 0
    %1810 = vmatpush1.bf16.msra.mxu0 0
    %1811 = vmatprep.subr.bf16.mxu0 0
    %1812 = vmatpush1.bf16.msra.mxu0 0
    %1813 = vmatprep.subr.bf16.mxu0 0
    %1814 = vmatpush1.bf16.msra.mxu0 0
    %1815 = vmatprep.subr.bf16.mxu0 0
    %1816 = vmatpush1.bf16.msra.mxu0 0
    %1817 = vmatprep.subr.bf16.mxu0 0
    %1818 = vmatpush1.bf16.msra.mxu0 0
    %1819 = vmatprep.subr.bf16.mxu0 0
    %1820 = vmatpush1.bf16.msra.mxu0 0
    %1821 = vmatprep.subr.bf16.mxu0 0
    %1822 = vmatpush1.bf16.msra.mxu0 0
    %1823 = vmatprep.subr.bf16.mxu0 0
    %1824 = vmatpush1.bf16.msra.mxu0 0
    %1825 = vmatprep.subr.bf16.mxu0 0
    %1826 = vmatpush1.bf16.msra.mxu0 0
    %1827 = vmatprep.subr.bf16.mxu0 0
    %1828 = vmatpush1.bf16.msra.mxu0 0
    %1829 = vmatprep.subr.bf16.mxu0 0
    %1830 = vmatpush1.bf16.msra.mxu0 0
    %1831 = vmatprep.subr.bf16.mxu0 0
    %1832 = vmatpush1.bf16.msra.mxu0 0
    %1833 = vmatprep.mubr.bf16.mxu0 0
    %1834 = vmatmul.mubr.bf16.gmra.mrb[0].mxu0 %v1541
    %v1835 = vpop.f32.mrb[0].mxu0
    %v1836 = vadd.f32 %v1351, %v1835
    %v1837 = vpop.f32.mrb[0].mxu0
    %v1838 = vadd.f32 %v1355, %v1837
    %v1839 = vpop.f32.mrb[0].mxu0
    %v1840 = vadd.f32 %v1351, %v1839
    %v1841 = vpop.f32.mrb[0].mxu0
    %v1842 = vadd.f32 %v1355, %v1841
    %1843 = vdwg.mxu0
    %1844 = vmatprep.subr.bf16.mxu0 %v1491
    %1845 = vmatpush1.bf16.msra.mxu0 %v1490
    %1846 = vmatprep.subr.bf16.mxu0 %v1507
    %1847 = vmatpush1.bf16.msra.mxu0 %v1506
    %1848 = vmatprep.subr.bf16.mxu0 0
    %1849 = vmatpush1.bf16.msra.mxu0 0
    %1850 = vmatprep.subr.bf16.mxu0 0
    %1851 = vmatpush1.bf16.msra.mxu0 0
    %1852 = vmatprep.subr.bf16.mxu0 0
    %1853 = vmatpush1.bf16.msra.mxu0 0
    %1854 = vmatprep.subr.bf16.mxu0 0
    %1855 = vmatpush1.bf16.msra.mxu0 0
    %1856 = vmatprep.subr.bf16.mxu0 0
    %1857 = vmatpush1.bf16.msra.mxu0 0
    %1858 = vmatprep.subr.bf16.mxu0 0
    %1859 = vmatpush1.bf16.msra.mxu0 0
    %1860 = vmatprep.subr.bf16.mxu0 0
    %1861 = vmatpush1.bf16.msra.mxu0 0
    %1862 = vmatprep.subr.bf16.mxu0 0
    %1863 = vmatpush1.bf16.msra.mxu0 0
    %1864 = vmatprep.subr.bf16.mxu0 0
    %1865 = vmatpush1.bf16.msra.mxu0 0
    %1866 = vmatprep.subr.bf16.mxu0 0
    %1867 = vmatpush1.bf16.msra.mxu0 0
    %1868 = vmatprep.subr.bf16.mxu0 0
    %1869 = vmatpush1.bf16.msra.mxu0 0
    %1870 = vmatprep.subr.bf16.mxu0 0
    %1871 = vmatpush1.bf16.msra.mxu0 0
    %1872 = vmatprep.subr.bf16.mxu0 0
    %1873 = vmatpush1.bf16.msra.mxu0 0
    %1874 = vmatprep.subr.bf16.mxu0 0
    %1875 = vmatpush1.bf16.msra.mxu0 0
    %1876 = vmatprep.mubr.bf16.mxu0 0
    %1877 = vmatmul.mubr.bf16.gmra.mrb[0].mxu0 %v1541
    %v1878 = vpop.f32.mrb[0].mxu0
    %v1879 = vadd.f32 %v1359, %v1878
    %v1880 = vpop.f32.mrb[0].mxu0
    %v1881 = vadd.f32 %v1363, %v1880
    %v1882 = vpop.f32.mrb[0].mxu0
    %v1883 = vadd.f32 %v1359, %v1882
    %v1884 = vpop.f32.mrb[0].mxu0
    %v1885 = vadd.f32 %v1363, %v1884
    %1886 = vdwg.mxu0
    %v1887 = vmax.f32 %v1578, 0.0
    %v1888 = vmax.f32 %v1580, 0.0
    %v1889 = vmax.f32 %v1621, 0.0
    %v1890 = vmax.f32 %v1623, 0.0
    %v1891 = vmax.f32 %v1664, 0.0
    %v1892 = vmax.f32 %v1666, 0.0
    %v1893 = vmax.f32 %v1707, 0.0
    %v1894 = vmax.f32 %v1709, 0.0
    %v1895 = vmax.f32 %v1750, 0.0
    %v1896 = vmax.f32 %v1752, 0.0
    %v1897 = vmax.f32 %v1793, 0.0
    %v1898 = vmax.f32 %v1795, 0.0
    %v1899 = vmax.f32 %v1836, 0.0
    %v1900 = vmax.f32 %v1838, 0.0
    %v1901 = vmax.f32 %v1879, 0.0
    %v1902 = vmax.f32 %v1881, 0.0
    %v1903 = vmax.f32 %v1582, 0.0
    %v1904 = vmax.f32 %v1584, 0.0
    %v1905 = vmax.f32 %v1625, 0.0
    %v1906 = vmax.f32 %v1627, 0.0
    %v1907 = vmax.f32 %v1668, 0.0
    %v1908 = vmax.f32 %v1670, 0.0
    %v1909 = vmax.f32 %v1711, 0.0
    %v1910 = vmax.f32 %v1713, 0.0
    %v1911 = vmax.f32 %v1754, 0.0
    %v1912 = vmax.f32 %v1756, 0.0
    %v1913 = vmax.f32 %v1797, 0.0
    %v1914 = vmax.f32 %v1799, 0.0
    %v1915 = vmax.f32 %v1840, 0.0
    %v1916 = vmax.f32 %v1842, 0.0
    %v1917 = vmax.f32 %v1883, 0.0
    %v1918 = vmax.f32 %v1885, 0.0
    %v1919 = vpack.c.bf16 %v1903, %v1887
    %v1920 = vpack.c.bf16 %v1904, %v1888
    %v1921 = vpack.c.bf16 %v1905, %v1889
    %v1922 = vpack.c.bf16 %v1906, %v1890
    %v1923 = vpack.c.bf16 %v1907, %v1891
    %v1924 = vpack.c.bf16 %v1908, %v1892
    %v1925 = vpack.c.bf16 %v1909, %v1893
    %v1926 = vpack.c.bf16 %v1910, %v1894
    %v1927 = vpack.c.bf16 %v1911, %v1895
    %v1928 = vpack.c.bf16 %v1912, %v1896
    %v1929 = vpack.c.bf16 %v1913, %v1897
    %v1930 = vpack.c.bf16 %v1914, %v1898
    %v1931 = vpack.c.bf16 %v1915, %v1899
    %v1932 = vpack.c.bf16 %v1916, %v1900
    %v1933 = vpack.c.bf16 %v1917, %v1901
    %v1934 = vpack.c.bf16 %v1918, %v1902
    %v1935 = vld [vmem:[#allocation11] sm:$0xff]
    %v1936 = vld [vmem:[#allocation11 + $0x8] sm:$0xff]
    %v1937 = vld [vmem:[#allocation11 + $0x10] sm:$0xff]
    %v1938 = vld [vmem:[#allocation11 + $0x18] sm:$0xff]
    %v1939 = vld [vmem:[#allocation11 + $0x20] sm:$0xff]
    %v1940 = vld [vmem:[#allocation11 + $0x28] sm:$0xff]
    %v1941 = vld [vmem:[#allocation11 + $0x30] sm:$0xff]
    %v1942 = vld [vmem:[#allocation11 + $0x38] sm:$0xff]
    %v1943 = vld [vmem:[#allocation11 + $0x40] sm:$0xff]
    %v1944 = vld [vmem:[#allocation11 + $0x48] sm:$0xff]
    %v1945 = vld [vmem:[#allocation11 + $0x50] sm:$0xff]
    %v1946 = vld [vmem:[#allocation11 + $0x58] sm:$0xff]
    %v1947 = vld [vmem:[#allocation11 + $0x60] sm:$0xff]
    %v1948 = vld [vmem:[#allocation11 + $0x68] sm:$0xff]
    %v1949 = vld [vmem:[#allocation11 + $0x70] sm:$0xff]
    %v1950 = vld [vmem:[#allocation11 + $0x78] sm:$0xff]
    %v1951 = vld [vmem:[#allocation11 + $0x80] sm:$0xff]
    %v1952 = vld [vmem:[#allocation11 + $0x88] sm:$0xff]
    %v1953 = vld [vmem:[#allocation11 + $0x90] sm:$0xff]
    %v1954 = vld [vmem:[#allocation11 + $0x98] sm:$0xff]
    %v1955 = vld [vmem:[#allocation11 + $0xa0] sm:$0xff]
    %v1956 = vld [vmem:[#allocation11 + $0xa8] sm:$0xff]
    %v1957 = vld [vmem:[#allocation11 + $0xb0] sm:$0xff]
    %v1958 = vld [vmem:[#allocation11 + $0xb8] sm:$0xff]
    %v1959 = vld [vmem:[#allocation11 + $0xc0] sm:$0xff]
    %v1960 = vld [vmem:[#allocation11 + $0xc8] sm:$0xff]
    %v1961 = vld [vmem:[#allocation11 + $0xd0] sm:$0xff]
    %v1962 = vld [vmem:[#allocation11 + $0xd8] sm:$0xff]
    %v1963 = vld [vmem:[#allocation11 + $0xe0] sm:$0xff]
    %v1964 = vld [vmem:[#allocation11 + $0xe8] sm:$0xff]
    %v1965 = vld [vmem:[#allocation11 + $0xf0] sm:$0xff]
    %v1966 = vld [vmem:[#allocation11 + $0xf8] sm:$0xff]
    %v1967 = vlaneseq
    %v1968 = vshrl.u32 %v1967, 7
    %v1969 = vsub.s32 4, %v1968
    %v1970 = vrot.slane %v115, %v1969
    %v2003 = vunpack.c.l.b16 %v1935
    %v2004 = vunpack.c.h.b16 %v1935
    %v2005 = vunpack.c.l.b16 %v1936
    %v2006 = vunpack.c.h.b16 %v1936
    %v2007 = vunpack.c.l.b16 %v1937
    %v2008 = vunpack.c.h.b16 %v1937
    %v2009 = vunpack.c.l.b16 %v1938
    %v2010 = vunpack.c.h.b16 %v1938
    %v2011 = vunpack.c.l.b16 %v1939
    %v2012 = vunpack.c.h.b16 %v1939
    %v2013 = vunpack.c.l.b16 %v1940
    %v2014 = vunpack.c.h.b16 %v1940
    %v2015 = vunpack.c.l.b16 %v1941
    %v2016 = vunpack.c.h.b16 %v1941
    %v2017 = vunpack.c.l.b16 %v1942
    %v2018 = vunpack.c.h.b16 %v1942
    %v2019 = vunpack.c.l.b16 %v1943
    %v2020 = vunpack.c.h.b16 %v1943
    %v2021 = vunpack.c.l.b16 %v1944
    %v2022 = vunpack.c.h.b16 %v1944
    %v2023 = vunpack.c.l.b16 %v1945
    %v2024 = vunpack.c.h.b16 %v1945
    %v2025 = vunpack.c.l.b16 %v1946
    %v2026 = vunpack.c.h.b16 %v1946
    %v2027 = vunpack.c.l.b16 %v1947
    %v2028 = vunpack.c.h.b16 %v1947
    %v2029 = vunpack.c.l.b16 %v1948
    %v2030 = vunpack.c.h.b16 %v1948
    %v2031 = vunpack.c.l.b16 %v1949
    %v2032 = vunpack.c.h.b16 %v1949
    %v2033 = vunpack.c.l.b16 %v1950
    %v2034 = vunpack.c.h.b16 %v1950
    %v2035 = vunpack.c.l.b16 %v1951
    %v2036 = vunpack.c.h.b16 %v1951
    %v2037 = vunpack.c.l.b16 %v1952
    %v2038 = vunpack.c.h.b16 %v1952
    %v2039 = vunpack.c.l.b16 %v1953
    %v2040 = vunpack.c.h.b16 %v1953
    %v2041 = vunpack.c.l.b16 %v1954
    %v2042 = vunpack.c.h.b16 %v1954
    %v2043 = vunpack.c.l.b16 %v1955
    %v2044 = vunpack.c.h.b16 %v1955
    %v2045 = vunpack.c.l.b16 %v1956
    %v2046 = vunpack.c.h.b16 %v1956
    %v2047 = vunpack.c.l.b16 %v1957
    %v2048 = vunpack.c.h.b16 %v1957
    %v2049 = vunpack.c.l.b16 %v1958
    %v2050 = vunpack.c.h.b16 %v1958
    %v2051 = vunpack.c.l.b16 %v1959
    %v2052 = vunpack.c.h.b16 %v1959
    %v2053 = vunpack.c.l.b16 %v1960
    %v2054 = vunpack.c.h.b16 %v1960
    %v2055 = vunpack.c.l.b16 %v1961
    %v2056 = vunpack.c.h.b16 %v1961
    %v2057 = vunpack.c.l.b16 %v1962
    %v2058 = vunpack.c.h.b16 %v1962
    %v2059 = vunpack.c.l.b16 %v1963
    %v2060 = vunpack.c.h.b16 %v1963
    %v2061 = vunpack.c.l.b16 %v1964
    %v2062 = vunpack.c.h.b16 %v1964
    %v2063 = vunpack.c.l.b16 %v1965
    %v2064 = vunpack.c.h.b16 %v1965
    %v2065 = vunpack.c.l.b16 %v1966
    %v2066 = vunpack.c.h.b16 %v1966
    %v2067 = vpack.c.b16 %v2019, %v2003
    %v2068 = vpack.c.b16 %v2020, %v2004
    %v2069 = vpack.c.b16 %v2021, %v2005
    %v2070 = vpack.c.b16 %v2022, %v2006
    %v2071 = vpack.c.b16 %v2023, %v2007
    %v2072 = vpack.c.b16 %v2024, %v2008
    %v2073 = vpack.c.b16 %v2025, %v2009
    %v2074 = vpack.c.b16 %v2026, %v2010
    %v2075 = vpack.c.b16 %v2027, %v2011
    %v2076 = vpack.c.b16 %v2028, %v2012
    %v2077 = vpack.c.b16 %v2029, %v2013
    %v2078 = vpack.c.b16 %v2030, %v2014
    %v2079 = vpack.c.b16 %v2031, %v2015
    %v2080 = vpack.c.b16 %v2032, %v2016
    %v2081 = vpack.c.b16 %v2033, %v2017
    %v2082 = vpack.c.b16 %v2034, %v2018
    %v2083 = vpack.c.b16 %v2051, %v2035
    %v2084 = vpack.c.b16 %v2052, %v2036
    %v2085 = vpack.c.b16 %v2053, %v2037
    %v2086 = vpack.c.b16 %v2054, %v2038
    %v2087 = vpack.c.b16 %v2055, %v2039
    %v2088 = vpack.c.b16 %v2056, %v2040
    %v2089 = vpack.c.b16 %v2057, %v2041
    %v2090 = vpack.c.b16 %v2058, %v2042
    %v2091 = vpack.c.b16 %v2059, %v2043
    %v2092 = vpack.c.b16 %v2060, %v2044
    %v2093 = vpack.c.b16 %v2061, %v2045
    %v2094 = vpack.c.b16 %v2062, %v2046
    %v2095 = vpack.c.b16 %v2063, %v2047
    %v2096 = vpack.c.b16 %v2064, %v2048
    %v2097 = vpack.c.b16 %v2065, %v2049
    %v2098 = vpack.c.b16 %v2066, %v2050
    %2131 = vmatprep.subr.bf16.mxu0 %v2068
    %2132 = vmatpush1.bf16.xpose.msra.mxu0 %v2067
    %2133 = vmatprep.subr.bf16.mxu0 %v2084
    %2134 = vmatpush1.bf16.xpose.msra.mxu0 %v2083
    %2135 = vmatprep.subr.bf16.mxu0 0
    %2136 = vmatpush1.bf16.xpose.msra.mxu0 0
    %2137 = vmatprep.subr.bf16.mxu0 0
    %2138 = vmatpush1.bf16.xpose.msra.mxu0 0
    %2139 = vmatprep.subr.bf16.mxu0 0
    %2140 = vmatpush1.bf16.xpose.msra.mxu0 0
    %2141 = vmatprep.subr.bf16.mxu0 0
    %2142 = vmatpush1.bf16.xpose.msra.mxu0 0
    %2143 = vmatprep.subr.bf16.mxu0 0
    %2144 = vmatpush1.bf16.xpose.msra.mxu0 0
    %2145 = vmatprep.subr.bf16.mxu0 0
    %2146 = vmatpush1.bf16.xpose.msra.mxu0 0
    %2147 = vmatprep.subr.bf16.mxu0 0
    %2148 = vmatpush1.bf16.xpose.msra.mxu0 0
    %2149 = vmatprep.subr.bf16.mxu0 0
    %2150 = vmatpush1.bf16.xpose.msra.mxu0 0
    %2151 = vmatprep.subr.bf16.mxu0 0
    %2152 = vmatpush1.bf16.xpose.msra.mxu0 0
    %2153 = vmatprep.subr.bf16.mxu0 0
    %2154 = vmatpush1.bf16.xpose.msra.mxu0 0
    %2155 = vmatprep.subr.bf16.mxu0 0
    %2156 = vmatpush1.bf16.xpose.msra.mxu0 0
    %2157 = vmatprep.subr.bf16.mxu0 0
    %2158 = vmatpush1.bf16.xpose.msra.mxu0 0
    %2159 = vmatprep.subr.bf16.mxu0 0
    %2160 = vmatpush1.bf16.xpose.msra.mxu0 0
    %2161 = vmatprep.subr.bf16.mxu0 0
    %2162 = vmatpush1.bf16.xpose.msra.mxu0 0
    %2163 = vmatprep.mubr.bf16.mxu0 %v1920
    %2164 = vmatmul.mubr.bf16.gmra.mrb[0].mxu0 %v1919
    %v2165 = vpop.f32.mrb[0].mxu0
    %v2166 = vadd.f32 %v1970, %v2165
    %v2167 = vpop.f32.mrb[0].mxu0
    %v2168 = vpop.f32.mrb[0].mxu0
    %v2169 = vadd.f32 %v1970, %v2168
    %v2170 = vpop.f32.mrb[0].mxu0
    %2171 = vdwg.mxu0
    %2172 = vmatprep.subr.bf16.mxu0 %v2070
    %2173 = vmatpush1.bf16.xpose.msra.mxu0 %v2069
    %2174 = vmatprep.subr.bf16.mxu0 %v2086
    %2175 = vmatpush1.bf16.xpose.msra.mxu0 %v2085
    %2176 = vmatprep.subr.bf16.mxu0 0
    %2177 = vmatpush1.bf16.xpose.msra.mxu0 0
    %2178 = vmatprep.subr.bf16.mxu0 0
    %2179 = vmatpush1.bf16.xpose.msra.mxu0 0
    %2180 = vmatprep.subr.bf16.mxu0 0
    %2181 = vmatpush1.bf16.xpose.msra.mxu0 0
    %2182 = vmatprep.subr.bf16.mxu0 0
    %2183 = vmatpush1.bf16.xpose.msra.mxu0 0
    %2184 = vmatprep.subr.bf16.mxu0 0
    %2185 = vmatpush1.bf16.xpose.msra.mxu0 0
    %2186 = vmatprep.subr.bf16.mxu0 0
    %2187 = vmatpush1.bf16.xpose.msra.mxu0 0
    %2188 = vmatprep.subr.bf16.mxu0 0
    %2189 = vmatpush1.bf16.xpose.msra.mxu0 0
    %2190 = vmatprep.subr.bf16.mxu0 0
    %2191 = vmatpush1.bf16.xpose.msra.mxu0 0
    %2192 = vmatprep.subr.bf16.mxu0 0
    %2193 = vmatpush1.bf16.xpose.msra.mxu0 0
    %2194 = vmatprep.subr.bf16.mxu0 0
    %2195 = vmatpush1.bf16.xpose.msra.mxu0 0
    %2196 = vmatprep.subr.bf16.mxu0 0
    %2197 = vmatpush1.bf16.xpose.msra.mxu0 0
    %2198 = vmatprep.subr.bf16.mxu0 0
    %2199 = vmatpush1.bf16.xpose.msra.mxu0 0
    %2200 = vmatprep.subr.bf16.mxu0 0
    %2201 = vmatpush1.bf16.xpose.msra.mxu0 0
    %2202 = vmatprep.subr.bf16.mxu0 0
    %2203 = vmatpush1.bf16.xpose.msra.mxu0 0
    %2204 = vmatprep.mubr.bf16.mxu0 %v1922
    %2205 = vmatmul.mubr.bf16.gmra.mrb[0].mxu0 %v1921
    %v2206 = vpop.f32.mrb[0].mxu0
    %v2207 = vadd.f32 %v2166, %v2206
    %v2208 = vpop.f32.mrb[0].mxu0
    %v2209 = vpop.f32.mrb[0].mxu0
    %v2210 = vadd.f32 %v2169, %v2209
    %v2211 = vpop.f32.mrb[0].mxu0
    %2212 = vdwg.mxu0
    %2213 = vmatprep.subr.bf16.mxu0 %v2072
    %2214 = vmatpush1.bf16.xpose.msra.mxu0 %v2071
    %2215 = vmatprep.subr.bf16.mxu0 %v2088
    %2216 = vmatpush1.bf16.xpose.msra.mxu0 %v2087
    %2217 = vmatprep.subr.bf16.mxu0 0
    %2218 = vmatpush1.bf16.xpose.msra.mxu0 0
    %2219 = vmatprep.subr.bf16.mxu0 0
    %2220 = vmatpush1.bf16.xpose.msra.mxu0 0
    %2221 = vmatprep.subr.bf16.mxu0 0
    %2222 = vmatpush1.bf16.xpose.msra.mxu0 0
    %2223 = vmatprep.subr.bf16.mxu0 0
    %2224 = vmatpush1.bf16.xpose.msra.mxu0 0
    %2225 = vmatprep.subr.bf16.mxu0 0
    %2226 = vmatpush1.bf16.xpose.msra.mxu0 0
    %2227 = vmatprep.subr.bf16.mxu0 0
    %2228 = vmatpush1.bf16.xpose.msra.mxu0 0
    %2229 = vmatprep.subr.bf16.mxu0 0
    %2230 = vmatpush1.bf16.xpose.msra.mxu0 0
    %2231 = vmatprep.subr.bf16.mxu0 0
    %2232 = vmatpush1.bf16.xpose.msra.mxu0 0
    %2233 = vmatprep.subr.bf16.mxu0 0
    %2234 = vmatpush1.bf16.xpose.msra.mxu0 0
    %2235 = vmatprep.subr.bf16.mxu0 0
    %2236 = vmatpush1.bf16.xpose.msra.mxu0 0
    %2237 = vmatprep.subr.bf16.mxu0 0
    %2238 = vmatpush1.bf16.xpose.msra.mxu0 0
    %2239 = vmatprep.subr.bf16.mxu0 0
    %2240 = vmatpush1.bf16.xpose.msra.mxu0 0
    %2241 = vmatprep.subr.bf16.mxu0 0
    %2242 = vmatpush1.bf16.xpose.msra.mxu0 0
    %2243 = vmatprep.subr.bf16.mxu0 0
    %2244 = vmatpush1.bf16.xpose.msra.mxu0 0
    %2245 = vmatprep.mubr.bf16.mxu0 %v1924
    %2246 = vmatmul.mubr.bf16.gmra.mrb[0].mxu0 %v1923
    %v2247 = vpop.f32.mrb[0].mxu0
    %v2248 = vadd.f32 %v2207, %v2247
    %v2249 = vpop.f32.mrb[0].mxu0
    %v2250 = vpop.f32.mrb[0].mxu0
    %v2251 = vadd.f32 %v2210, %v2250
    %v2252 = vpop.f32.mrb[0].mxu0
    %2253 = vdwg.mxu0
    %2254 = vmatprep.subr.bf16.mxu0 %v2074
    %2255 = vmatpush1.bf16.xpose.msra.mxu0 %v2073
    %2256 = vmatprep.subr.bf16.mxu0 %v2090
    %2257 = vmatpush1.bf16.xpose.msra.mxu0 %v2089
    %2258 = vmatprep.subr.bf16.mxu0 0
    %2259 = vmatpush1.bf16.xpose.msra.mxu0 0
    %2260 = vmatprep.subr.bf16.mxu0 0
    %2261 = vmatpush1.bf16.xpose.msra.mxu0 0
    %2262 = vmatprep.subr.bf16.mxu0 0
    %2263 = vmatpush1.bf16.xpose.msra.mxu0 0
    %2264 = vmatprep.subr.bf16.mxu0 0
    %2265 = vmatpush1.bf16.xpose.msra.mxu0 0
    %2266 = vmatprep.subr.bf16.mxu0 0
    %2267 = vmatpush1.bf16.xpose.msra.mxu0 0
    %2268 = vmatprep.subr.bf16.mxu0 0
    %2269 = vmatpush1.bf16.xpose.msra.mxu0 0
    %2270 = vmatprep.subr.bf16.mxu0 0
    %2271 = vmatpush1.bf16.xpose.msra.mxu0 0
    %2272 = vmatprep.subr.bf16.mxu0 0
    %2273 = vmatpush1.bf16.xpose.msra.mxu0 0
    %2274 = vmatprep.subr.bf16.mxu0 0
    %2275 = vmatpush1.bf16.xpose.msra.mxu0 0
    %2276 = vmatprep.subr.bf16.mxu0 0
    %2277 = vmatpush1.bf16.xpose.msra.mxu0 0
    %2278 = vmatprep.subr.bf16.mxu0 0
    %2279 = vmatpush1.bf16.xpose.msra.mxu0 0
    %2280 = vmatprep.subr.bf16.mxu0 0
    %2281 = vmatpush1.bf16.xpose.msra.mxu0 0
    %2282 = vmatprep.subr.bf16.mxu0 0
    %2283 = vmatpush1.bf16.xpose.msra.mxu0 0
    %2284 = vmatprep.subr.bf16.mxu0 0
    %2285 = vmatpush1.bf16.xpose.msra.mxu0 0
    %2286 = vmatprep.mubr.bf16.mxu0 %v1926
    %2287 = vmatmul.mubr.bf16.gmra.mrb[0].mxu0 %v1925
    %v2288 = vpop.f32.mrb[0].mxu0
    %v2289 = vadd.f32 %v2248, %v2288
    %v2290 = vpop.f32.mrb[0].mxu0
    %v2291 = vpop.f32.mrb[0].mxu0
    %v2292 = vadd.f32 %v2251, %v2291
    %v2293 = vpop.f32.mrb[0].mxu0
    %2294 = vdwg.mxu0
    %2295 = vmatprep.subr.bf16.mxu0 %v2076
    %2296 = vmatpush1.bf16.xpose.msra.mxu0 %v2075
    %2297 = vmatprep.subr.bf16.mxu0 %v2092
    %2298 = vmatpush1.bf16.xpose.msra.mxu0 %v2091
    %2299 = vmatprep.subr.bf16.mxu0 0
    %2300 = vmatpush1.bf16.xpose.msra.mxu0 0
    %2301 = vmatprep.subr.bf16.mxu0 0
    %2302 = vmatpush1.bf16.xpose.msra.mxu0 0
    %2303 = vmatprep.subr.bf16.mxu0 0
    %2304 = vmatpush1.bf16.xpose.msra.mxu0 0
    %2305 = vmatprep.subr.bf16.mxu0 0
    %2306 = vmatpush1.bf16.xpose.msra.mxu0 0
    %2307 = vmatprep.subr.bf16.mxu0 0
    %2308 = vmatpush1.bf16.xpose.msra.mxu0 0
    %2309 = vmatprep.subr.bf16.mxu0 0
    %2310 = vmatpush1.bf16.xpose.msra.mxu0 0
    %2311 = vmatprep.subr.bf16.mxu0 0
    %2312 = vmatpush1.bf16.xpose.msra.mxu0 0
    %2313 = vmatprep.subr.bf16.mxu0 0
    %2314 = vmatpush1.bf16.xpose.msra.mxu0 0
    %2315 = vmatprep.subr.bf16.mxu0 0
    %2316 = vmatpush1.bf16.xpose.msra.mxu0 0
    %2317 = vmatprep.subr.bf16.mxu0 0
    %2318 = vmatpush1.bf16.xpose.msra.mxu0 0
    %2319 = vmatprep.subr.bf16.mxu0 0
    %2320 = vmatpush1.bf16.xpose.msra.mxu0 0
    %2321 = vmatprep.subr.bf16.mxu0 0
    %2322 = vmatpush1.bf16.xpose.msra.mxu0 0
    %2323 = vmatprep.subr.bf16.mxu0 0
    %2324 = vmatpush1.bf16.xpose.msra.mxu0 0
    %2325 = vmatprep.subr.bf16.mxu0 0
    %2326 = vmatpush1.bf16.xpose.msra.mxu0 0
    %2327 = vmatprep.mubr.bf16.mxu0 %v1928
    %2328 = vmatmul.mubr.bf16.gmra.mrb[0].mxu0 %v1927
    %v2329 = vpop.f32.mrb[0].mxu0
    %v2330 = vadd.f32 %v2289, %v2329
    %v2331 = vpop.f32.mrb[0].mxu0
    %v2332 = vpop.f32.mrb[0].mxu0
    %v2333 = vadd.f32 %v2292, %v2332
    %v2334 = vpop.f32.mrb[0].mxu0
    %2335 = vdwg.mxu0
    %2336 = vmatprep.subr.bf16.mxu0 %v2078
    %2337 = vmatpush1.bf16.xpose.msra.mxu0 %v2077
    %2338 = vmatprep.subr.bf16.mxu0 %v2094
    %2339 = vmatpush1.bf16.xpose.msra.mxu0 %v2093
    %2340 = vmatprep.subr.bf16.mxu0 0
    %2341 = vmatpush1.bf16.xpose.msra.mxu0 0
    %2342 = vmatprep.subr.bf16.mxu0 0
    %2343 = vmatpush1.bf16.xpose.msra.mxu0 0
    %2344 = vmatprep.subr.bf16.mxu0 0
    %2345 = vmatpush1.bf16.xpose.msra.mxu0 0
    %2346 = vmatprep.subr.bf16.mxu0 0
    %2347 = vmatpush1.bf16.xpose.msra.mxu0 0
    %2348 = vmatprep.subr.bf16.mxu0 0
    %2349 = vmatpush1.bf16.xpose.msra.mxu0 0
    %2350 = vmatprep.subr.bf16.mxu0 0
    %2351 = vmatpush1.bf16.xpose.msra.mxu0 0
    %2352 = vmatprep.subr.bf16.mxu0 0
    %2353 = vmatpush1.bf16.xpose.msra.mxu0 0
    %2354 = vmatprep.subr.bf16.mxu0 0
    %2355 = vmatpush1.bf16.xpose.msra.mxu0 0
    %2356 = vmatprep.subr.bf16.mxu0 0
    %2357 = vmatpush1.bf16.xpose.msra.mxu0 0
    %2358 = vmatprep.subr.bf16.mxu0 0
    %2359 = vmatpush1.bf16.xpose.msra.mxu0 0
    %2360 = vmatprep.subr.bf16.mxu0 0
    %2361 = vmatpush1.bf16.xpose.msra.mxu0 0
    %2362 = vmatprep.subr.bf16.mxu0 0
    %2363 = vmatpush1.bf16.xpose.msra.mxu0 0
    %2364 = vmatprep.subr.bf16.mxu0 0
    %2365 = vmatpush1.bf16.xpose.msra.mxu0 0
    %2366 = vmatprep.subr.bf16.mxu0 0
    %2367 = vmatpush1.bf16.xpose.msra.mxu0 0
    %2368 = vmatprep.mubr.bf16.mxu0 %v1930
    %2369 = vmatmul.mubr.bf16.gmra.mrb[0].mxu0 %v1929
    %v2370 = vpop.f32.mrb[0].mxu0
    %v2371 = vadd.f32 %v2330, %v2370
    %v2372 = vpop.f32.mrb[0].mxu0
    %v2373 = vpop.f32.mrb[0].mxu0
    %v2374 = vadd.f32 %v2333, %v2373
    %v2375 = vpop.f32.mrb[0].mxu0
    %2376 = vdwg.mxu0
    %2377 = vmatprep.subr.bf16.mxu0 %v2080
    %2378 = vmatpush1.bf16.xpose.msra.mxu0 %v2079
    %2379 = vmatprep.subr.bf16.mxu0 %v2096
    %2380 = vmatpush1.bf16.xpose.msra.mxu0 %v2095
    %2381 = vmatprep.subr.bf16.mxu0 0
    %2382 = vmatpush1.bf16.xpose.msra.mxu0 0
    %2383 = vmatprep.subr.bf16.mxu0 0
    %2384 = vmatpush1.bf16.xpose.msra.mxu0 0
    %2385 = vmatprep.subr.bf16.mxu0 0
    %2386 = vmatpush1.bf16.xpose.msra.mxu0 0
    %2387 = vmatprep.subr.bf16.mxu0 0
    %2388 = vmatpush1.bf16.xpose.msra.mxu0 0
    %2389 = vmatprep.subr.bf16.mxu0 0
    %2390 = vmatpush1.bf16.xpose.msra.mxu0 0
    %2391 = vmatprep.subr.bf16.mxu0 0
    %2392 = vmatpush1.bf16.xpose.msra.mxu0 0
    %2393 = vmatprep.subr.bf16.mxu0 0
    %2394 = vmatpush1.bf16.xpose.msra.mxu0 0
    %2395 = vmatprep.subr.bf16.mxu0 0
    %2396 = vmatpush1.bf16.xpose.msra.mxu0 0
    %2397 = vmatprep.subr.bf16.mxu0 0
    %2398 = vmatpush1.bf16.xpose.msra.mxu0 0
    %2399 = vmatprep.subr.bf16.mxu0 0
    %2400 = vmatpush1.bf16.xpose.msra.mxu0 0
    %2401 = vmatprep.subr.bf16.mxu0 0
    %2402 = vmatpush1.bf16.xpose.msra.mxu0 0
    %2403 = vmatprep.subr.bf16.mxu0 0
    %2404 = vmatpush1.bf16.xpose.msra.mxu0 0
    %2405 = vmatprep.subr.bf16.mxu0 0
    %2406 = vmatpush1.bf16.xpose.msra.mxu0 0
    %2407 = vmatprep.subr.bf16.mxu0 0
    %2408 = vmatpush1.bf16.xpose.msra.mxu0 0
    %2409 = vmatprep.mubr.bf16.mxu0 %v1932
    %2410 = vmatmul.mubr.bf16.gmra.mrb[0].mxu0 %v1931
    %v2411 = vpop.f32.mrb[0].mxu0
    %v2412 = vadd.f32 %v2371, %v2411
    %v2413 = vpop.f32.mrb[0].mxu0
    %v2414 = vpop.f32.mrb[0].mxu0
    %v2415 = vadd.f32 %v2374, %v2414
    %v2416 = vpop.f32.mrb[0].mxu0
    %2417 = vdwg.mxu0
    %2418 = vmatprep.subr.bf16.mxu0 %v2082
    %2419 = vmatpush1.bf16.xpose.msra.mxu0 %v2081
    %2420 = vmatprep.subr.bf16.mxu0 %v2098
    %2421 = vmatpush1.bf16.xpose.msra.mxu0 %v2097
    %2422 = vmatprep.subr.bf16.mxu0 0
    %2423 = vmatpush1.bf16.xpose.msra.mxu0 0
    %2424 = vmatprep.subr.bf16.mxu0 0
    %2425 = vmatpush1.bf16.xpose.msra.mxu0 0
    %2426 = vmatprep.subr.bf16.mxu0 0
    %2427 = vmatpush1.bf16.xpose.msra.mxu0 0
    %2428 = vmatprep.subr.bf16.mxu0 0
    %2429 = vmatpush1.bf16.xpose.msra.mxu0 0
    %2430 = vmatprep.subr.bf16.mxu0 0
    %2431 = vmatpush1.bf16.xpose.msra.mxu0 0
    %2432 = vmatprep.subr.bf16.mxu0 0
    %2433 = vmatpush1.bf16.xpose.msra.mxu0 0
    %2434 = vmatprep.subr.bf16.mxu0 0
    %2435 = vmatpush1.bf16.xpose.msra.mxu0 0
    %2436 = vmatprep.subr.bf16.mxu0 0
    %2437 = vmatpush1.bf16.xpose.msra.mxu0 0
    %2438 = vmatprep.subr.bf16.mxu0 0
    %2439 = vmatpush1.bf16.xpose.msra.mxu0 0
    %2440 = vmatprep.subr.bf16.mxu0 0
    %2441 = vmatpush1.bf16.xpose.msra.mxu0 0
    %2442 = vmatprep.subr.bf16.mxu0 0
    %2443 = vmatpush1.bf16.xpose.msra.mxu0 0
    %2444 = vmatprep.subr.bf16.mxu0 0
    %2445 = vmatpush1.bf16.xpose.msra.mxu0 0
    %2446 = vmatprep.subr.bf16.mxu0 0
    %2447 = vmatpush1.bf16.xpose.msra.mxu0 0
    %2448 = vmatprep.subr.bf16.mxu0 0
    %2449 = vmatpush1.bf16.xpose.msra.mxu0 0
    %2450 = vmatprep.mubr.bf16.mxu0 %v1934
    %2451 = vmatmul.mubr.bf16.gmra.mrb[0].mxu0 %v1933
    %v2452 = vpop.f32.mrb[0].mxu0
    %v2453 = vadd.f32 %v2412, %v2452
    %v2454 = vpop.f32.mrb[0].mxu0
    %v2455 = vpop.f32.mrb[0].mxu0
    %v2456 = vadd.f32 %v2415, %v2455
    %v2457 = vpop.f32.mrb[0].mxu0
    %2458 = vdwg.mxu0
    %v2459 = vadd.f32 %v1209, %v2453
    %v2460 = vadd.f32 %v1210, %v2456
    %2461 = vst.msk [vmem:[#allocation13] sm:$0xff] %vm121, %v2459
    %2462 = vst.msk [vmem:[#allocation13 + $0x8] sm:$0xff] %vm121, %v2460
    // Predicated region
    $region58: #{tpu_custom_call.1} parent=1 // pred_check
      _
    $region59: #{tpu_custom_call.1} parent=1 // pred_check_branch
      %2464 = sbr.rel (0) target = $region61
    $region60: #{tpu_custom_call.1} parent=1 // pred_region
      %s2466 = ssub.s32 256, 256
      %2467 = vsyncadd [#allocation4], %s2466
      %s2468 = sshll.u32 [#allocation13], 4
      %s2469 = int_to_ptr.vmem [resolvable:$true] %s2468
      %2474 = dma.vmem_to_hbm [thread:$0]  %s2469, 256, %s8, [#allocation4], 128, 128, 8
    $region61: #{tpu_custom_call.1} parent=1 // pred_fallthru
      _
    // Predicated region
    $region62: #{tpu_custom_call.1} parent=1 // pred_check
      _
    $region63: #{tpu_custom_call.1} parent=1 // pred_check_branch
      %2476 = sbr.rel (0) target = $region65
    $region64: #{tpu_custom_call.1} parent=1 // pred_region
      %2477 = dma.done [#allocation4], 256
    $region65: #{tpu_custom_call.1} parent=1 // pred_fallthru
      _
    %2478 = vsyncpa [#allocation3], 1
    %2479 = vsyncpa [#allocation6], 1
    %2480 = vsyncpa [#allocation9], 1
    %2481 = vsyncpa [#allocation12], 1
    %2482 = vsyncpa [#allocation4], 1

</llo_original>
